<compile_context>
chip_gen: v5e
topology: v5e:2x2
jax: 0.10.0
libtpu: 0.0.40
codegen_flags: <defaults>
</compile_context>

<pallas_src>
import functools

import jax
import jax.numpy as jnp
from jax import lax
from jax.experimental import pallas as pl
from jax.experimental.pallas import tpu as pltpu

_NHIDDEN = 128

# VMEM budgets (bytes), conservative across generations (v7x: 64 MiB physical).
_FUSED_BUDGET = 20 << 20     # whole-(norm_nc, HW) slab -> single fused pass
_PASS2_BUDGET = 24 << 20     # per-tile footprint target for the tiled pass
_STATS_BUDGET = 16 << 20     # double-buffered bf16 x tile for the stats pass
_VMEM_LIMIT_CAP = 48 << 20   # never request more scoped VMEM than this


# --------------------------------------------------------------------------
# Helpers: tiling and VMEM sizing
# --------------------------------------------------------------------------
def _pick_hw_tile(hw, max_tile):
    """Largest multiple-of-128 divisor of hw that is <= max_tile (or hw)."""
    max_tile = max(128, min(int(max_tile), hw))
    if hw <= max_tile:
        return hw
    t = (max_tile // 128) * 128
    while t >= 128:
        if hw % t == 0:
            return t
        t -= 128
    # TODO(synk): HW has no multiple-of-128 divisor; fall back to one full tile
    # (a cdiv grid with a masked ragged last tile would be safer for huge HW).
    return hw


def _pass2_column_bytes(norm_nc, label_nc, seg_nc, noise_nc, nhidden):
    """Approx. VMEM bytes needed per pixel column in the modulation pass."""
    # double-buffered bf16 HBM tiles: x, seg, n1, n2, pos, out
    io = 2 * 2 * (norm_nc + label_nc + 2 * noise_nc + 2 + norm_nc)
    # f32 temporaries: x/normalized, actv, gb, pmod scratch, iota/onehot, emb
    tmp = 4 * (2 * norm_nc + nhidden + 2 * seg_nc + 2 * seg_nc
               + 2 * label_nc + 2 * noise_nc)
    return io + tmp


def _vmem_limit(nbytes):
    return int(min(_VMEM_LIMIT_CAP, max(16 << 20, nbytes)))


# --------------------------------------------------------------------------
# Pass 1 (tiled path): per-(batch, channel) sum and sum-of-squares over HW.
# Accumulates into a f32 VMEM scratch; stores to the output once, on the last
# spatial tile (no per-step lane-sparse read-modify-write of the output).
# --------------------------------------------------------------------------
def _stats_kernel(x_ref, stats_ref, acc_ref):
    t = pl.program_id(1)
    x = x_ref[...].astype(jnp.float32)                  # (norm_nc, T1)
    s = jnp.sum(x, axis=1, keepdims=True)               # (norm_nc, 1)
    sq = jnp.sum(x * x, axis=1, keepdims=True)          # (norm_nc, 1)

    @pl.when(t == 0)
    def _():
        acc_ref[:, 0:1] = s
        acc_ref[:, 1:2] = sq

    @pl.when(t > 0)
    def _():
        acc_ref[:, 0:1] = acc_ref[:, 0:1] + s
        acc_ref[:, 1:2] = acc_ref[:, 1:2] + sq

    @pl.when(t == pl.num_programs(1) - 1)
    def _():
        stats_ref[...] = acc_ref[...]


# --------------------------------------------------------------------------
# Pass 2 (tiled path): normalize + SPADE modulation on one (norm_nc, T) tile.
# Grid is (n_t, B) with b innermost ("arbitrary"): the batch-shared positional
# modulation is computed once per tile (at b == 0) into a VMEM scratch.
# --------------------------------------------------------------------------
def _vasis_kernel(x_ref, seg_ref, pos_ref, n1_ref, n2_ref, stats_ref,
                  w_sh_ref, b_sh_ref, w_gb_ref, b_gb_ref,
                  w_p_ref, b_p_ref, tab_ref,
                  out_ref, pmod_ref,
                  *, label_nc, seg_nc, noise_nc, inv_hw, eps):
    f32 = jnp.float32

    # ---- param-free instance norm using precomputed full-HW statistics ----
    # TODO(synk): var = E[x^2] - mean^2 can lose precision when |mean| >> std;
    # the fused single-pass path below uses a centered variance instead.
    x = x_ref[...].astype(f32)                           # (norm_nc, T)
    stats = stats_ref[...]                               # (norm_nc, 2) f32
    mean = stats[:, 0:1] * inv_hw
    var = jnp.maximum(stats[:, 1:2] * inv_hw - mean * mean, 0.0)
    normalized = (x - mean) * lax.rsqrt(var + eps)       # (norm_nc, T)

    # ---- positional modulation (pos='fix'): shared across the batch --------
    @pl.when(pl.program_id(1) == 0)
    def _():
        posv = pos_ref[...].astype(f32)                  # (2, T)
        pmod_ref[...] = (w_p_ref[:, 0:1] * posv[0:1, :]
                         + w_p_ref[:, 1:2] * posv[1:2, :]
                         + b_p_ref[...])                 # (2*seg_nc, T)

    # ---- mlp_shared (1x1 conv + ReLU) and fused gamma|beta matmul (bf16 MXU)
    seg = seg_ref[...]                                   # (label_nc, T) bf16
    actv = jnp.dot(w_sh_ref[...], seg, preferred_element_type=f32) + b_sh_ref[...]
    actv = jnp.maximum(actv, 0.0)                        # (nhidden, T) f32
    gb = jnp.dot(w_gb_ref[...], actv.astype(w_gb_ref.dtype),
                 preferred_element_type=f32) + b_gb_ref[...]
    gb = gb * (1.0 + pmod_ref[...])                      # (2*seg_nc, T)

    # ---- variation-aware noise branch (mode_noise='mul_cat') ---------------
    # torch.argmax first-max semantics over the label-channel (sublane) axis.
    segf = seg.astype(f32)
    iota = lax.broadcasted_iota(jnp.int32, segf.shape, 0)      # (label_nc, T)
    is_max = segf >= jnp.max(segf, axis=0, keepdims=True)
    idx = jnp.min(jnp.where(is_max, iota, label_nc), axis=0, keepdims=True)
    onehot = (iota == idx).astype(tab_ref.dtype)                # (label_nc, T)
    emb = jnp.dot(tab_ref[...], onehot, preferred_element_type=f32)  # (2*noise_nc, T)
    gamma_noise = n1_ref[...].astype(f32) * emb[:noise_nc]
    beta_noise = n2_ref[...].astype(f32) * emb[noise_nc:]

    # ---- combine halves; two direct lane-dense half-stores (no concat copy)
    out_ref[:seg_nc, :] = (normalized[:seg_nc] * (1.0 + gb[:seg_nc])
                           + gb[seg_nc:]).astype(out_ref.dtype)
    out_ref[seg_nc:, :] = (normalized[seg_nc:] * (1.0 + gamma_noise)
                           + beta_noise).astype(out_ref.dtype)


# --------------------------------------------------------------------------
# Fused single-pass kernel: whole (norm_nc, HW) slab per batch element.
# Reads x from HBM once and uses a centered (cancellation-free) variance.
# --------------------------------------------------------------------------
def _vasis_fused_kernel(x_ref, seg_ref, pos_ref, n1_ref, n2_ref,
                        w_sh_ref, b_sh_ref, w_gb_ref, b_gb_ref,
                        w_p_ref, b_p_ref, tab_ref,
                        out_ref,
                        *, label_nc, seg_nc, noise_nc, eps):
    f32 = jnp.float32

    x = x_ref[...].astype(f32)                           # (norm_nc, HW)
    mean = jnp.mean(x, axis=1, keepdims=True)
    xc = x - mean
    var = jnp.mean(xc * xc, axis=1, keepdims=True)
    normalized = xc * lax.rsqrt(var + eps)

    posv = pos_ref[...].astype(f32)                      # (2, HW)
    pmod = (w_p_ref[:, 0:1] * posv[0:1, :]
            + w_p_ref[:, 1:2] * posv[1:2, :] + b_p_ref[...])

    seg = seg_ref[...]                                   # (label_nc, HW) bf16
    actv = jnp.dot(w_sh_ref[...], seg, preferred_element_type=f32) + b_sh_ref[...]
    actv = jnp.maximum(actv, 0.0)
    gb = jnp.dot(w_gb_ref[...], actv.astype(w_gb_ref.dtype),
                 preferred_element_type=f32) + b_gb_ref[...]
    gb = gb * (1.0 + pmod)

    segf = seg.astype(f32)
    iota = lax.broadcasted_iota(jnp.int32, segf.shape, 0)
    is_max = segf >= jnp.max(segf, axis=0, keepdims=True)
    idx = jnp.min(jnp.where(is_max, iota, label_nc), axis=0, keepdims=True)
    onehot = (iota == idx).astype(tab_ref.dtype)
    emb = jnp.dot(tab_ref[...], onehot, preferred_element_type=f32)
    gamma_noise = n1_ref[...].astype(f32) * emb[:noise_nc]
    beta_noise = n2_ref[...].astype(f32) * emb[noise_nc:]

    out_ref[:seg_nc, :] = (normalized[:seg_nc] * (1.0 + gb[:seg_nc])
                           + gb[seg_nc:]).astype(out_ref.dtype)
    out_ref[seg_nc:, :] = (normalized[seg_nc:] * (1.0 + gamma_noise)
                           + beta_noise).astype(out_ref.dtype)


# --------------------------------------------------------------------------
# Parameter fusion (module-form -> kernel-form). MXU operands stay bf16.
# --------------------------------------------------------------------------
def prepare_kernel_params(p, mxu_dtype=jnp.bfloat16):
    f32 = jnp.float32
    return dict(
        w_sh=p["w_sh"].astype(mxu_dtype),                                  # (nhidden, label_nc)
        b_sh=p["b_sh"].reshape(-1, 1).astype(f32),                         # (nhidden, 1)
        w_gb=jnp.concatenate([p["w_g"], p["w_b"]], axis=0).astype(mxu_dtype),   # (2*seg_nc, nhidden)
        b_gb=jnp.concatenate([p["b_g"], p["b_b"]], axis=0).reshape(-1, 1).astype(f32),
        w_p=jnp.concatenate([p["w_pg"], p["w_pb"]], axis=0).astype(f32),   # (2*seg_nc, 2)
        b_p=jnp.concatenate([p["b_pg"], p["b_pb"]], axis=0).reshape(-1, 1).astype(f32),
        tab=jnp.concatenate([p["tab_gg"].T, p["tab_bg"].T], axis=0).astype(mxu_dtype),  # (2*noise_nc, label_nc)
    )


# --------------------------------------------------------------------------
# Wrapper / dispatch
# --------------------------------------------------------------------------
def vasis_forward(x_t, seg_t, pos_t, n1_t, n2_t, kp, *, seg_nc, eps=1e-5,
                  force_two_pass=False, max_hw_tile=None, max_stats_tile=None):
    """x_t/seg_t/n*_t: (B, C, HW); pos_t: (1, 2, HW); kp: fused kernel params."""
    B, norm_nc, HW = x_t.shape
    label_nc = seg_t.shape[1]
    noise_nc = norm_nc - seg_nc
    nhidden = kp["w_sh"].shape[0]
    assert noise_nc > 0 and seg_nc + noise_nc == norm_nc
    # NOTE: seg_nc should be a multiple of 8 (ideally 16 for bf16 output) so the
    # half-slices / half-stores stay sublane-tile aligned; misaligned values
    # still work but trigger Mosaic relayout copies.

    col = _pass2_column_bytes(norm_nc, label_nc, seg_nc, noise_nc, nhidden)
    weight_args = (kp["w_sh"], kp["b_sh"], kp["w_gb"], kp["b_gb"],
                   kp["w_p"], kp["b_p"], kp["tab"])

    # ---- single-pass fused path: x read once, centered variance ------------
    if (not force_two_pass) and col * HW <= _FUSED_BUDGET:
        kernel = functools.partial(_vasis_fused_kernel, label_nc=label_nc,
                                   seg_nc=seg_nc, noise_nc=noise_nc, eps=eps)

        def per_b(c):
            return pl.BlockSpec((None, c, HW), lambda b: (b, 0, 0))

        def shared(c):
            return pl.BlockSpec((None, c, HW), lambda b: (0, 0, 0))

        def full(arr):
            return pl.BlockSpec(arr.shape, lambda b: (0, 0))

        return pl.pallas_call(
            kernel,
            out_shape=jax.ShapeDtypeStruct((B, norm_nc, HW), x_t.dtype),
            grid_spec=pltpu.PrefetchScalarGridSpec(
                num_scalar_prefetch=0,
                grid=(B,),
                in_specs=[per_b(norm_nc), per_b(label_nc), shared(2),
                          per_b(noise_nc), per_b(noise_nc)]
                         + [full(w) for w in weight_args],
                out_specs=per_b(norm_nc)),
            compiler_params=pltpu.CompilerParams(
                dimension_semantics=("parallel",),
                vmem_limit_bytes=_vmem_limit(col * HW * 3 // 2 + (4 << 20))),
        )(x_t, seg_t, pos_t, n1_t, n2_t, *weight_args)

    # ---- pass 1: instance-norm statistics over large spatial tiles ---------
    t1_cap = min(16384, max(128, (_STATS_BUDGET // max(1, 4 * norm_nc)) // 128 * 128))
    if max_stats_tile is not None:
        t1_cap = min(t1_cap, max_stats_tile)
    T1 = _pick_hw_tile(HW, t1_cap)
    n_t1 = HW // T1

    stats = pl.pallas_call(
        _stats_kernel,
        out_shape=jax.ShapeDtypeStruct((B, norm_nc, 2), jnp.float32),
        grid_spec=pltpu.PrefetchScalarGridSpec(
            num_scalar_prefetch=0,
            grid=(B, n_t1),
            in_specs=[pl.BlockSpec((None, norm_nc, T1), lambda b, t: (b, 0, t))],
            out_specs=pl.BlockSpec((None, norm_nc, 2), lambda b, t: (b, 0, 0)),
            scratch_shapes=[pltpu.VMEM((norm_nc, 2), jnp.float32)]),
        compiler_params=pltpu.CompilerParams(
            dimension_semantics=("parallel", "arbitrary"),
            vmem_limit_bytes=_vmem_limit(4 * norm_nc * T1 + (2 << 20))),
    )(x_t)

    # ---- pass 2: modulation, grid (n_t, B) so the spatial axis is parallel --
    t2_cap = min(2048, max(128, (_PASS2_BUDGET // col) // 128 * 128))
    if max_hw_tile is not None:
        t2_cap = min(t2_cap, max_hw_tile)
    T = _pick_hw_tile(HW, t2_cap)
    n_t = HW // T

    kernel = functools.partial(_vasis_kernel, label_nc=label_nc, seg_nc=seg_nc,
                               noise_nc=noise_nc, inv_hw=1.0 / HW, eps=eps)

    def per_bt(c):
        return pl.BlockSpec((None, c, T), lambda t, b: (b, 0, t))

    def shared_t(c):  # shared across batch (fixed positional grid)
        return pl.BlockSpec((None, c, T), lambda t, b: (0, 0, t))

    def full2(arr):
        return pl.BlockSpec(arr.shape, lambda t, b: (0, 0))

    return pl.pallas_call(
        kernel,
        out_shape=jax.ShapeDtypeStruct((B, norm_nc, HW), x_t.dtype),
        grid_spec=pltpu.PrefetchScalarGridSpec(
            num_scalar_prefetch=0,
            grid=(n_t, B),
            in_specs=[per_bt(norm_nc),                                     # x
                      per_bt(label_nc),                                    # segmap
                      shared_t(2),                                         # pos grid
                      per_bt(noise_nc),                                    # noise_1
                      per_bt(noise_nc),                                    # noise_2
                      pl.BlockSpec((None, norm_nc, 2), lambda t, b: (b, 0, 0))]
                     + [full2(w) for w in weight_args],
            out_specs=per_bt(norm_nc),
            scratch_shapes=[pltpu.VMEM((2 * seg_nc, T), jnp.float32)]),
        compiler_params=pltpu.CompilerParams(
            # b is innermost & sequential so the per-tile pmod scratch is valid.
            dimension_semantics=("parallel", "arbitrary"),
            vmem_limit_bytes=_vmem_limit(col * T * 2 + (4 << 20))),
    )(x_t, seg_t, pos_t, n1_t, n2_t, stats, *weight_args)


# --------------------------------------------------------------------------
# Pure-JAX reference (same math, module-form params, (B, C, HW) layout).
# --------------------------------------------------------------------------
def reference_forward(x, seg, pos, n1, n2, p, *, seg_nc):
    eps = 1e-5
    mean = jnp.mean(x, axis=-1, keepdims=True)
    var = jnp.mean((x - mean) ** 2, axis=-1, keepdims=True)
    normalized = (x - mean) / jnp.sqrt(var + eps)

    actv = jnp.maximum(
        jnp.einsum('oc,bcp->bop', p["w_sh"], seg) + p["b_sh"][None, :, None], 0.0)
    gamma = jnp.einsum('oc,bcp->bop', p["w_g"], actv) + p["b_g"][None, :, None]
    beta = jnp.einsum('oc,bcp->bop', p["w_b"], actv) + p["b_b"][None, :, None]
    pos_g = jnp.einsum('oc,bcp->bop', p["w_pg"], pos) + p["b_pg"][None, :, None]
    pos_b = jnp.einsum('oc,bcp->bop', p["w_pb"], pos) + p["b_pb"][None, :, None]
    gamma = gamma * (1.0 + pos_g)
    beta = beta * (1.0 + pos_b)

    idx = jnp.argmax(seg, axis=1)                               # (B, HW)
    gamma_noise = n1 * jnp.swapaxes(p["tab_gg"][idx], 1, 2)
    beta_noise = n2 * jnp.swapaxes(p["tab_bg"][idx], 1, 2)

    gamma_full = jnp.concatenate([gamma, gamma_noise], axis=1)
    beta_full = jnp.concatenate([beta, beta_noise], axis=1)
    return normalized * (1.0 + gamma_full) + beta_full


if __name__ == "__main__":
    # Small, module-consistent shapes (seg_nc multiple of 16 -> aligned stores).
    B, norm_nc, H, W = 2, 32, 16, 16
    label_nc = 8                      # args.semantic_nc
    seg_nc = norm_nc // 2             # noise_nc='all', mode_noise='mul_cat'
    noise_nc = norm_nc - seg_nc
    nhidden = _NHIDDEN
    HW = H * W

    key = jax.random.PRNGKey(0)
    keys = jax.random.split(key, 12)

    # ---- parameters (module-form: conv weight = (Cout, Cin), bias = (Cout,)) ----
    params = {
        "w_sh": 0.1 * jax.random.normal(keys[0], (nhidden, label_nc), jnp.float32),
        "b_sh": 0.1 * jax.random.normal(keys[1], (nhidden,), jnp.float32),
        "w_g": 0.1 * jax.random.normal(keys[2], (seg_nc, nhidden), jnp.float32),
        "b_g": 0.1 * jax.random.normal(keys[3], (seg_nc,), jnp.float32),
        "w_b": 0.1 * jax.random.normal(keys[4], (seg_nc, nhidden), jnp.float32),
        "b_b": 0.1 * jax.random.normal(keys[5], (seg_nc,), jnp.float32),
        # conv_pos_gamma / conv_pos_beta: Conv2d(2, seg_nc, 1), zero-initialized
        "w_pg": jnp.zeros((seg_nc, 2), jnp.float32),
        "b_pg": jnp.zeros((seg_nc,), jnp.float32),
        "w_pb": jnp.zeros((seg_nc, 2), jnp.float32),
        "b_pb": jnp.zeros((seg_nc,), jnp.float32),
        # gamma_noise_gamma / beta_noise_gamma: torch.rand(label_nc, noise_nc)
        "tab_gg": jax.random.uniform(keys[6], (label_nc, noise_nc), jnp.float32),
        "tab_bg": jax.random.uniform(keys[7], (label_nc, noise_nc), jnp.float32),
    }

    # ---- inputs (NCHW like PyTorch) ----------------------------------------
    x = jax.random.normal(keys[8], (B, norm_nc, H, W), jnp.float32)
    segmap_small = jax.random.normal(keys[9], (B, label_nc, H // 2, W // 2),
                                     jnp.float32)
    # F.interpolate(..., mode='nearest') to x's spatial size (glue, plain JAX)
    segmap = jnp.repeat(jnp.repeat(segmap_small, 2, axis=2), 2, axis=3)

    # TODO(synk): torch.rand noise inside forward() cannot bit-match; it is
    # generated host-side and passed to both the kernel and the reference.
    noise_1 = jax.random.uniform(keys[10], (B, noise_nc, H, W), jnp.float32)
    noise_2 = jax.random.uniform(keys[11], (B, noise_nc, H, W), jnp.float32)

    # fixed positional grid (pos == 'fix'): shape (2, H, W)
    xv = (jnp.arange(H, dtype=jnp.float32) / H * 2.0 - 1.0)[:, None]
    yv = (jnp.arange(W, dtype=jnp.float32) / W * 2.0 - 1.0)[None, :]
    gamma_pos = jnp.stack([jnp.broadcast_to(xv, (H, W)),
                           jnp.broadcast_to(yv, (H, W))], axis=0)   # (2, H, W)

    # ---- lane-dense (B, C, HW) layout, bf16 HBM I/O ------------------------
    def to_chw(a):  # (B, C, H, W) -> (B, C, HW)
        return a.reshape(a.shape[0], a.shape[1], -1)

    bf16 = jnp.bfloat16
    x_t = to_chw(x).astype(bf16)
    seg_t = to_chw(segmap).astype(bf16)
    n1_t = to_chw(noise_1).astype(bf16)
    n2_t = to_chw(noise_2).astype(bf16)
    pos_t = gamma_pos.reshape(1, 2, HW).astype(bf16)     # shared over batch

    kp = prepare_kernel_params(params)

    # Reference on the same bf16-quantized inputs, f32 math, f32 params.
    ref = reference_forward(x_t.astype(jnp.float32), seg_t.astype(jnp.float32),
                            pos_t.astype(jnp.float32), n1_t.astype(jnp.float32),
                            n2_t.astype(jnp.float32), params, seg_nc=seg_nc)

    # 1) default dispatch: small slab -> fused single-pass kernel
    out_fused = jax.block_until_ready(
        vasis_forward(x_t, seg_t, pos_t, n1_t, n2_t, kp, seg_nc=seg_nc))
    assert out_fused.shape == (B, norm_nc, HW)
    assert jnp.allclose(out_fused.astype(jnp.float32), ref,
                        atol=5e-2, rtol=5e-2), "fused path mismatch vs reference"

    # 2) forced two-pass tiled path (small tiles to exercise accumulation)
    out_tiled = jax.block_until_ready(
        vasis_forward(x_t, seg_t, pos_t, n1_t, n2_t, kp, seg_nc=seg_nc,
                      force_two_pass=True, max_hw_tile=128, max_stats_tile=128))
    assert out_tiled.shape == (B, norm_nc, HW)
    assert jnp.allclose(out_tiled.astype(jnp.float32), ref,
                        atol=5e-2, rtol=5e-2), "tiled path mismatch vs reference"

    # back to NCHW (layout glue)
    out = out_fused.astype(jnp.float32).reshape(B, norm_nc, H, W)
    assert out.shape == (B, norm_nc, H, W)

    print("KERNEL_OK")
</pallas_src>

<mosaic_0001>
module attributes {stable_mosaic.version = 11 : i64} {
  func.func @_vasis_fused_kernel(%arg0: i32, %arg1: memref<1x32x256xbf16, #tpu.memory_space<vmem>>, %arg2: memref<1x8x256xbf16, #tpu.memory_space<vmem>>, %arg3: memref<1x2x256xbf16, #tpu.memory_space<vmem>>, %arg4: memref<1x16x256xbf16, #tpu.memory_space<vmem>>, %arg5: memref<1x16x256xbf16, #tpu.memory_space<vmem>>, %arg6: memref<128x8xbf16, #tpu.memory_space<vmem>>, %arg7: memref<128x1xf32, #tpu.memory_space<vmem>>, %arg8: memref<32x128xbf16, #tpu.memory_space<vmem>>, %arg9: memref<32x1xf32, #tpu.memory_space<vmem>>, %arg10: memref<32x2xf32, #tpu.memory_space<vmem>>, %arg11: memref<32x1xf32, #tpu.memory_space<vmem>>, %arg12: memref<32x8xbf16, #tpu.memory_space<vmem>>, %arg13: memref<1x32x256xbf16, #tpu.memory_space<vmem>>) attributes {dimension_semantics = [#tpu.dimension_semantics<parallel>], iteration_bounds = array<i64: 2>, scalar_prefetch = 0 : i64, scratch_operands = 0 : i64, tpu.core_type = #tpu.core_type<tc>, window_params = [{transform_indices = @transform_0, window_bounds = array<i64: 1, 32, 256>}, {transform_indices = @transform_1, window_bounds = array<i64: 1, 8, 256>}, {pipeline_mode = #tpu.pipeline_mode<synchronous>, transform_indices = @transform_2, window_bounds = array<i64: 1, 2, 256>}, {transform_indices = @transform_3, window_bounds = array<i64: 1, 16, 256>}, {transform_indices = @transform_4, window_bounds = array<i64: 1, 16, 256>}, {pipeline_mode = #tpu.pipeline_mode<synchronous>, transform_indices = @transform_5, window_bounds = array<i64: 128, 8>}, {pipeline_mode = #tpu.pipeline_mode<synchronous>, transform_indices = @transform_6, window_bounds = array<i64: 128, 1>}, {pipeline_mode = #tpu.pipeline_mode<synchronous>, transform_indices = @transform_7, window_bounds = array<i64: 32, 128>}, {pipeline_mode = #tpu.pipeline_mode<synchronous>, transform_indices = @transform_8, window_bounds = array<i64: 32, 1>}, {pipeline_mode = #tpu.pipeline_mode<synchronous>, transform_indices = @transform_9, window_bounds = array<i64: 32, 2>}, {pipeline_mode = #tpu.pipeline_mode<synchronous>, transform_indices = @transform_10, window_bounds = array<i64: 32, 1>}, {pipeline_mode = #tpu.pipeline_mode<synchronous>, transform_indices = @transform_11, window_bounds = array<i64: 32, 8>}, {transform_indices = @transform_12, window_bounds = array<i64: 1, 32, 256>}]} {
    %c0 = arith.constant 0 : index
    %c0_0 = arith.constant 0 : index
    %c0_1 = arith.constant 0 : index
    %0 = vector.load %arg1[%c0, %c0_0, %c0_1] : memref<1x32x256xbf16, #tpu.memory_space<vmem>>, vector<1x32x256xbf16>
    %1 = vector.shape_cast %0 : vector<1x32x256xbf16> to vector<32x256xbf16>
    %2 = arith.extf %1 : vector<32x256xbf16> to vector<32x256xf32>
    %cst = arith.constant dense<0.000000e+00> : vector<32xf32>
    %3 = vector.multi_reduction <add>, %2, %cst [1] : vector<32x256xf32> to vector<32xf32>
    %4 = vector.shape_cast %3 : vector<32xf32> to vector<32x1xf32>
    %cst_2 = arith.constant 2.560000e+02 : f32
    %5 = vector.broadcast %cst_2 : f32 to vector<32x1xf32>
    %6 = arith.divf %4, %5 : vector<32x1xf32>
    %7 = vector.broadcast %6 : vector<32x1xf32> to vector<32x256xf32>
    %8 = arith.subf %2, %7 : vector<32x256xf32>
    %9 = arith.mulf %8, %8 : vector<32x256xf32>
    %cst_3 = arith.constant dense<0.000000e+00> : vector<32xf32>
    %10 = vector.multi_reduction <add>, %9, %cst_3 [1] : vector<32x256xf32> to vector<32xf32>
    %11 = vector.shape_cast %10 : vector<32xf32> to vector<32x1xf32>
    %cst_4 = arith.constant 2.560000e+02 : f32
    %12 = vector.broadcast %cst_4 : f32 to vector<32x1xf32>
    %13 = arith.divf %11, %12 : vector<32x1xf32>
    %cst_5 = arith.constant 9.99999974E-6 : f32
    %14 = vector.broadcast %cst_5 : f32 to vector<32x1xf32>
    %15 = arith.addf %13, %14 : vector<32x1xf32>
    %16 = math.rsqrt %15 : vector<32x1xf32>
    %17 = vector.broadcast %16 : vector<32x1xf32> to vector<32x256xf32>
    %18 = arith.mulf %8, %17 : vector<32x256xf32>
    %c0_6 = arith.constant 0 : index
    %c0_7 = arith.constant 0 : index
    %c0_8 = arith.constant 0 : index
    %19 = vector.load %arg3[%c0_6, %c0_7, %c0_8] : memref<1x2x256xbf16, #tpu.memory_space<vmem>>, vector<1x2x256xbf16>
    %20 = vector.shape_cast %19 : vector<1x2x256xbf16> to vector<2x256xbf16>
    %21 = arith.extf %20 : vector<2x256xbf16> to vector<2x256xf32>
    %c0_9 = arith.constant 0 : index
    %c0_10 = arith.constant 0 : index
    %22 = vector.load %arg10[%c0_9, %c0_10] : memref<32x2xf32, #tpu.memory_space<vmem>>, vector<32x1xf32>
    %23 = vector.extract_strided_slice %21 {offsets = [0, 0], sizes = [1, 256], strides = [1, 1]} : vector<2x256xf32> to vector<1x256xf32>
    %24 = vector.broadcast %22 : vector<32x1xf32> to vector<32x256xf32>
    %25 = vector.broadcast %23 : vector<1x256xf32> to vector<32x256xf32>
    %26 = arith.mulf %24, %25 : vector<32x256xf32>
    %c0_11 = arith.constant 0 : index
    %c1 = arith.constant 1 : index
    %27 = vector.load %arg10[%c0_11, %c1] : memref<32x2xf32, #tpu.memory_space<vmem>>, vector<32x1xf32>
    %28 = vector.extract_strided_slice %21 {offsets = [1, 0], sizes = [1, 256], strides = [1, 1]} : vector<2x256xf32> to vector<1x256xf32>
    %29 = vector.broadcast %27 : vector<32x1xf32> to vector<32x256xf32>
    %30 = vector.broadcast %28 : vector<1x256xf32> to vector<32x256xf32>
    %31 = arith.mulf %29, %30 : vector<32x256xf32>
    %32 = arith.addf %26, %31 : vector<32x256xf32>
    %c0_12 = arith.constant 0 : index
    %c0_13 = arith.constant 0 : index
    %33 = vector.load %arg11[%c0_12, %c0_13] : memref<32x1xf32, #tpu.memory_space<vmem>>, vector<32x1xf32>
    %34 = vector.broadcast %33 : vector<32x1xf32> to vector<32x256xf32>
    %35 = arith.addf %32, %34 : vector<32x256xf32>
    %c0_14 = arith.constant 0 : index
    %c0_15 = arith.constant 0 : index
    %c0_16 = arith.constant 0 : index
    %36 = vector.load %arg2[%c0_14, %c0_15, %c0_16] : memref<1x8x256xbf16, #tpu.memory_space<vmem>>, vector<1x8x256xbf16>
    %37 = vector.shape_cast %36 : vector<1x8x256xbf16> to vector<8x256xbf16>
    %c0_17 = arith.constant 0 : index
    %c0_18 = arith.constant 0 : index
    %38 = vector.load %arg6[%c0_17, %c0_18] : memref<128x8xbf16, #tpu.memory_space<vmem>>, vector<128x8xbf16>
    %cst_19 = arith.constant dense<0.000000e+00> : vector<128x256xf32>
    %39 = tpu.matmul %38, %37, %cst_19 {dimension_numbers = #tpu.dot_dimension_numbers<[1], [0], [0], [1], [0, 0, 1, 1], [], []>} : vector<128x8xbf16>, vector<8x256xbf16>, vector<128x256xf32> -> vector<128x256xf32>
    %c0_20 = arith.constant 0 : index
    %c0_21 = arith.constant 0 : index
    %40 = vector.load %arg7[%c0_20, %c0_21] : memref<128x1xf32, #tpu.memory_space<vmem>>, vector<128x1xf32>
    %41 = vector.broadcast %40 : vector<128x1xf32> to vector<128x256xf32>
    %42 = arith.addf %39, %41 : vector<128x256xf32>
    %cst_22 = arith.constant 0.000000e+00 : f32
    %43 = vector.broadcast %cst_22 : f32 to vector<128x256xf32>
    %44 = arith.maximumf %42, %43 : vector<128x256xf32>
    %c0_23 = arith.constant 0 : index
    %c0_24 = arith.constant 0 : index
    %45 = vector.load %arg8[%c0_23, %c0_24] : memref<32x128xbf16, #tpu.memory_space<vmem>>, vector<32x128xbf16>
    %46 = arith.truncf %44 : vector<128x256xf32> to vector<128x256xbf16>
    %cst_25 = arith.constant dense<0.000000e+00> : vector<32x256xf32>
    %47 = tpu.matmul %45, %46, %cst_25 {dimension_numbers = #tpu.dot_dimension_numbers<[1], [0], [0], [1], [0, 0, 1, 1], [], []>} : vector<32x128xbf16>, vector<128x256xbf16>, vector<32x256xf32> -> vector<32x256xf32>
    %c0_26 = arith.constant 0 : index
    %c0_27 = arith.constant 0 : index
    %48 = vector.load %arg9[%c0_26, %c0_27] : memref<32x1xf32, #tpu.memory_space<vmem>>, vector<32x1xf32>
    %49 = vector.broadcast %48 : vector<32x1xf32> to vector<32x256xf32>
    %50 = arith.addf %47, %49 : vector<32x256xf32>
    %cst_28 = arith.constant 1.000000e+00 : f32
    %51 = vector.broadcast %cst_28 : f32 to vector<32x256xf32>
    %52 = arith.addf %51, %35 : vector<32x256xf32>
    %53 = arith.mulf %50, %52 : vector<32x256xf32>
    %54 = arith.extf %37 : vector<8x256xbf16> to vector<8x256xf32>
    %55 = tpu.iota {dimensions = array<i32: 0>} : vector<8x256xi32>
    %cst_29 = arith.constant dense<0xFF800000> : vector<256xf32>
    %56 = vector.multi_reduction <maximumf>, %54, %cst_29 [0] : vector<8x256xf32> to vector<256xf32>
    %57 = vector.shape_cast %56 : vector<256xf32> to vector<1x256xf32>
    %58 = vector.broadcast %57 : vector<1x256xf32> to vector<8x256xf32>
    %59 = arith.cmpf oge, %54, %58 : vector<8x256xf32>
    %c8_i32 = arith.constant 8 : i32
    %60 = vector.broadcast %c8_i32 : i32 to vector<8x256xi32>
    %61 = arith.select %59, %55, %60 : vector<8x256xi1>, vector<8x256xi32>
    %cst_30 = arith.constant dense<2147483647> : vector<256xi32>
    %62 = vector.multi_reduction <minsi>, %61, %cst_30 [0] : vector<8x256xi32> to vector<256xi32>
    %63 = vector.shape_cast %62 : vector<256xi32> to vector<1x256xi32>
    %64 = vector.broadcast %63 : vector<1x256xi32> to vector<8x256xi32>
    %65 = arith.cmpi eq, %55, %64 : vector<8x256xi32>
    %66 = arith.extui %65 : vector<8x256xi1> to vector<8x256xi32>
    %67 = arith.sitofp %66 : vector<8x256xi32> to vector<8x256xf32>
    %68 = arith.truncf %67 : vector<8x256xf32> to vector<8x256xbf16>
    %c0_31 = arith.constant 0 : index
    %c0_32 = arith.constant 0 : index
    %69 = vector.load %arg12[%c0_31, %c0_32] : memref<32x8xbf16, #tpu.memory_space<vmem>>, vector<32x8xbf16>
    %cst_33 = arith.constant dense<0.000000e+00> : vector<32x256xf32>
    %70 = tpu.matmul %69, %68, %cst_33 {dimension_numbers = #tpu.dot_dimension_numbers<[1], [0], [0], [1], [0, 0, 1, 1], [], []>} : vector<32x8xbf16>, vector<8x256xbf16>, vector<32x256xf32> -> vector<32x256xf32>
    %c0_34 = arith.constant 0 : index
    %c0_35 = arith.constant 0 : index
    %c0_36 = arith.constant 0 : index
    %71 = vector.load %arg4[%c0_34, %c0_35, %c0_36] : memref<1x16x256xbf16, #tpu.memory_space<vmem>>, vector<1x16x256xbf16>
    %72 = vector.shape_cast %71 : vector<1x16x256xbf16> to vector<16x256xbf16>
    %73 = arith.extf %72 : vector<16x256xbf16> to vector<16x256xf32>
    %74 = vector.extract_strided_slice %70 {offsets = [0, 0], sizes = [16, 256], strides = [1, 1]} : vector<32x256xf32> to vector<16x256xf32>
    %75 = arith.mulf %73, %74 : vector<16x256xf32>
    %c0_37 = arith.constant 0 : index
    %c0_38 = arith.constant 0 : index
    %c0_39 = arith.constant 0 : index
    %76 = vector.load %arg5[%c0_37, %c0_38, %c0_39] : memref<1x16x256xbf16, #tpu.memory_space<vmem>>, vector<1x16x256xbf16>
    %77 = vector.shape_cast %76 : vector<1x16x256xbf16> to vector<16x256xbf16>
    %78 = arith.extf %77 : vector<16x256xbf16> to vector<16x256xf32>
    %79 = vector.extract_strided_slice %70 {offsets = [16, 0], sizes = [16, 256], strides = [1, 1]} : vector<32x256xf32> to vector<16x256xf32>
    %80 = arith.mulf %78, %79 : vector<16x256xf32>
    %81 = vector.extract_strided_slice %18 {offsets = [0, 0], sizes = [16, 256], strides = [1, 1]} : vector<32x256xf32> to vector<16x256xf32>
    %82 = vector.extract_strided_slice %53 {offsets = [0, 0], sizes = [16, 256], strides = [1, 1]} : vector<32x256xf32> to vector<16x256xf32>
    %cst_40 = arith.constant 1.000000e+00 : f32
    %83 = vector.broadcast %cst_40 : f32 to vector<16x256xf32>
    %84 = arith.addf %83, %82 : vector<16x256xf32>
    %85 = arith.mulf %81, %84 : vector<16x256xf32>
    %86 = vector.extract_strided_slice %53 {offsets = [16, 0], sizes = [16, 256], strides = [1, 1]} : vector<32x256xf32> to vector<16x256xf32>
    %87 = arith.addf %85, %86 : vector<16x256xf32>
    %88 = arith.truncf %87 : vector<16x256xf32> to vector<16x256xbf16>
    %c0_41 = arith.constant 0 : index
    %c0_42 = arith.constant 0 : index
    %c0_43 = arith.constant 0 : index
    %89 = vector.load %arg13[%c0_41, %c0_42, %c0_43] : memref<1x32x256xbf16, #tpu.memory_space<vmem>>, vector<1x16x256xbf16>
    %90 = vector.shape_cast %89 : vector<1x16x256xbf16> to vector<16x256xbf16>
    %91 = vector.shape_cast %88 : vector<16x256xbf16> to vector<1x16x256xbf16>
    tpu.vector_store %arg13[%c0_41, %c0_42, %c0_43], %91 {strides = array<i32>} : memref<1x32x256xbf16, #tpu.memory_space<vmem>>, vector<1x16x256xbf16>,
    %92 = vector.extract_strided_slice %18 {offsets = [16, 0], sizes = [16, 256], strides = [1, 1]} : vector<32x256xf32> to vector<16x256xf32>
    %cst_44 = arith.constant 1.000000e+00 : f32
    %93 = vector.broadcast %cst_44 : f32 to vector<16x256xf32>
    %94 = arith.addf %93, %75 : vector<16x256xf32>
    %95 = arith.mulf %92, %94 : vector<16x256xf32>
    %96 = arith.addf %95, %80 : vector<16x256xf32>
    %97 = arith.truncf %96 : vector<16x256xf32> to vector<16x256xbf16>
    %c0_45 = arith.constant 0 : index
    %c16 = arith.constant 16 : index
    %c0_46 = arith.constant 0 : index
    %98 = vector.load %arg13[%c0_45, %c16, %c0_46] : memref<1x32x256xbf16, #tpu.memory_space<vmem>>, vector<1x16x256xbf16>
    %99 = vector.shape_cast %98 : vector<1x16x256xbf16> to vector<16x256xbf16>
    %100 = vector.shape_cast %97 : vector<16x256xbf16> to vector<1x16x256xbf16>
    tpu.vector_store %arg13[%c0_45, %c16, %c0_46], %100 {strides = array<i32>} : memref<1x32x256xbf16, #tpu.memory_space<vmem>>, vector<1x16x256xbf16>,
    return
  }
  func.func @transform_0(%arg0: i32) -> (i32, i32, i32) {
    %c0_i32 = arith.constant 0 : i32
    %c0_i32_0 = arith.constant 0 : i32
    %c0_i32_1 = arith.constant 0 : i32
    return %arg0, %c0_i32, %c0_i32_0 : i32, i32, i32
  }
  func.func @transform_1(%arg0: i32) -> (i32, i32, i32) {
    %c0_i32 = arith.constant 0 : i32
    %c0_i32_0 = arith.constant 0 : i32
    %c0_i32_1 = arith.constant 0 : i32
    return %arg0, %c0_i32, %c0_i32_0 : i32, i32, i32
  }
  func.func @transform_2(%arg0: i32) -> (i32, i32, i32) {
    %c0_i32 = arith.constant 0 : i32
    %c0_i32_0 = arith.constant 0 : i32
    %c0_i32_1 = arith.constant 0 : i32
    %c0_i32_2 = arith.constant 0 : i32
    return %c0_i32, %c0_i32_0, %c0_i32_1 : i32, i32, i32
  }
  func.func @transform_3(%arg0: i32) -> (i32, i32, i32) {
    %c0_i32 = arith.constant 0 : i32
    %c0_i32_0 = arith.constant 0 : i32
    %c0_i32_1 = arith.constant 0 : i32
    return %arg0, %c0_i32, %c0_i32_0 : i32, i32, i32
  }
  func.func @transform_4(%arg0: i32) -> (i32, i32, i32) {
    %c0_i32 = arith.constant 0 : i32
    %c0_i32_0 = arith.constant 0 : i32
    %c0_i32_1 = arith.constant 0 : i32
    return %arg0, %c0_i32, %c0_i32_0 : i32, i32, i32
  }
  func.func @transform_5(%arg0: i32) -> (i32, i32) {
    %c0_i32 = arith.constant 0 : i32
    %c0_i32_0 = arith.constant 0 : i32
    %c0_i32_1 = arith.constant 0 : i32
    return %c0_i32, %c0_i32_0 : i32, i32
  }
  func.func @transform_6(%arg0: i32) -> (i32, i32) {
    %c0_i32 = arith.constant 0 : i32
    %c0_i32_0 = arith.constant 0 : i32
    %c0_i32_1 = arith.constant 0 : i32
    return %c0_i32, %c0_i32_0 : i32, i32
  }
  func.func @transform_7(%arg0: i32) -> (i32, i32) {
    %c0_i32 = arith.constant 0 : i32
    %c0_i32_0 = arith.constant 0 : i32
    %c0_i32_1 = arith.constant 0 : i32
    return %c0_i32, %c0_i32_0 : i32, i32
  }
  func.func @transform_8(%arg0: i32) -> (i32, i32) {
    %c0_i32 = arith.constant 0 : i32
    %c0_i32_0 = arith.constant 0 : i32
    %c0_i32_1 = arith.constant 0 : i32
    return %c0_i32, %c0_i32_0 : i32, i32
  }
  func.func @transform_9(%arg0: i32) -> (i32, i32) {
    %c0_i32 = arith.constant 0 : i32
    %c0_i32_0 = arith.constant 0 : i32
    %c0_i32_1 = arith.constant 0 : i32
    return %c0_i32, %c0_i32_0 : i32, i32
  }
  func.func @transform_10(%arg0: i32) -> (i32, i32) {
    %c0_i32 = arith.constant 0 : i32
    %c0_i32_0 = arith.constant 0 : i32
    %c0_i32_1 = arith.constant 0 : i32
    return %c0_i32, %c0_i32_0 : i32, i32
  }
  func.func @transform_11(%arg0: i32) -> (i32, i32) {
    %c0_i32 = arith.constant 0 : i32
    %c0_i32_0 = arith.constant 0 : i32
    %c0_i32_1 = arith.constant 0 : i32
    return %c0_i32, %c0_i32_0 : i32, i32
  }
  func.func @transform_12(%arg0: i32) -> (i32, i32, i32) {
    %c0_i32 = arith.constant 0 : i32
    %c0_i32_0 = arith.constant 0 : i32
    %c0_i32_1 = arith.constant 0 : i32
    return %arg0, %c0_i32, %c0_i32_0 : i32, i32, i32
  }
}

</mosaic_0001>

<llo_original>
// kernel: tpu_custom_call.1
$region0: #{tpu_custom_call.1}
  #allocation0 [shape = 'u32[]', space=smem, size = 0x4, offset = 0x4, fixed_abs, tag = 'smem constant byte address 0x4 - core index']
  #allocation1 [shape = 'u32[72,128]{1,0:T(1,128)}', space=vmem, size = 0x9000, scoped, tag = 'internal scratch']
  %s0 = inlined_call_operand.vmem [shape: bf16[2,32,256], index: 0, kind: input, shape index: {}]
  %s1 = inlined_call_operand.vmem [shape: bf16[2,8,256], index: 1, kind: input, shape index: {}]
  %s2 = inlined_call_operand.vmem [shape: bf16[1,2,256], index: 2, kind: input, shape index: {}]
  %s3 = inlined_call_operand.vmem [shape: bf16[2,16,256], index: 3, kind: input, shape index: {}]
  %s4 = inlined_call_operand.vmem [shape: bf16[2,16,256], index: 4, kind: input, shape index: {}]
  %s5 = inlined_call_operand.vmem [shape: bf16[128,8], index: 5, kind: input, shape index: {}]
  %s6 = inlined_call_operand.vmem [shape: f32[128,1], index: 6, kind: input, shape index: {}]
  %s7 = inlined_call_operand.vmem [shape: bf16[32,128], index: 7, kind: input, shape index: {}]
  %s8 = inlined_call_operand.vmem [shape: f32[32,1], index: 8, kind: input, shape index: {}]
  %s9 = inlined_call_operand.vmem [shape: f32[32,2], index: 9, kind: input, shape index: {}]
  %s10 = inlined_call_operand.vmem [shape: f32[32,1], index: 10, kind: input, shape index: {}]
  %s11 = inlined_call_operand.vmem [shape: bf16[32,8], index: 11, kind: input, shape index: {}]
  %s12 = inlined_call_operand.hbm [shape: bf16[2,32,256], index: 12, kind: output, shape index: {}]
  %s13 = sld [smem:[#allocation0]]
  $region81: #{tpu_custom_call.1} parent=0
    _
  %s15 = ssub.s32 1, %s13
  %s16 = scalar_select 0, %s15, %s13
  $region1: #{tpu_custom_call.1} parent=0
    #allocation2 [shape = 'u8[32768]{0}', space=vmem, size = 0x8000, scoped, tag = 'output window, operand 0']
    #allocation3 [shape = 's32[2]{0}', space=sflag, size = 0x8, scoped, tag = 'scoped memory for tpu_custom_call.1']
    %17 = vsyncpa [#allocation3], 0
    %s18 = scalar_lea.sflag [#allocation3], 1
    %19 = vsyncpa %s18, 0
    loop: start=0, step=1, limit=4
    $region2: #{tpu_custom_call.1} parent=1 // loop_pre_header
      _
    $region3: #{tpu_custom_call.1} parent=1 // loop_header
      %s21 = sphi 0, %s25
      %p22 = scmp.ge.s32.totalorder %s21, 4
      %s31 = sphi 0, %s33
      %s34 = sphi 0, %s31
      %s35 = sphi 0, %s34
      %s51 = sphi 0, %s35
      %s57 = sphi 0, %s59
      %s60 = sphi 0, %s57
      %s61 = sphi 0, %s60
      %s77 = sphi 0, %s61
      %s81 = sphi 0, %s81
      %s83 = sphi 0, %s81
      %s84 = sphi 0, %s83
      %s98 = sphi 0, %s84
      %s104 = sphi 0, %s106
      %s107 = sphi 0, %s104
      %s108 = sphi 0, %s107
      %s124 = sphi 0, %s108
      %s130 = sphi 0, %s132
      %s133 = sphi 0, %s130
      %s134 = sphi 0, %s133
      %s150 = sphi 0, %s134
      %s154 = sphi 0, %s154
      %s156 = sphi 0, %s154
      %s157 = sphi 0, %s156
      %s171 = sphi 0, %s157
      %s175 = sphi 0, %s175
      %s177 = sphi 0, %s175
      %s178 = sphi 0, %s177
      %s192 = sphi 0, %s178
      %s196 = sphi 0, %s196
      %s198 = sphi 0, %s196
      %s199 = sphi 0, %s198
      %s213 = sphi 0, %s199
      %s217 = sphi 0, %s217
      %s219 = sphi 0, %s217
      %s220 = sphi 0, %s219
      %s234 = sphi 0, %s220
      %s238 = sphi 0, %s238
      %s240 = sphi 0, %s238
      %s241 = sphi 0, %s240
      %s255 = sphi 0, %s241
      %s259 = sphi 0, %s259
      %s261 = sphi 0, %s259
      %s262 = sphi 0, %s261
      %s276 = sphi 0, %s262
      %s280 = sphi 0, %s280
      %s282 = sphi 0, %s280
      %s283 = sphi 0, %s282
      %s297 = sphi 0, %s283
      %s303 = sphi 0, %s305
      %s306 = sphi 0, %s303
      %s307 = sphi 0, %s306
      %s323 = sphi 0, %s307
    $region4: #{tpu_custom_call.1} parent=1 // loop_header_branch
      %24 = sbr.rel (%p22) target = $region8
    $region5: #{tpu_custom_call.1} parent=1 // loop_body
      %s26 = ssub.s32 %s21, 1
      %s27 = ssub.s32 %s21, 2
      %s28 = sadd.s32 %s21, 1
      %s29 = ssub.s32 %s21, %s28
      %p30 = scmp.eq.s32.totalorder %s29, 0
      %s32 = sadd.s32 %s31, 1
      %s33 = scalar_select %p30, %s31, %s32
      %p36 = pneg %p30
      %p37 = scmp.eq.s32.totalorder %s21, 1
      %p38 = por %p36, %p37
      %p39 = scmp.ne.s32.totalorder %s31, %s34
      %p40 = scmp.eq.s32.totalorder %s21, 0
      %p41 = por %p39, %p40
      %p42 = scmp.ne.s32.totalorder %s31, %s34
      %p43 = scmp.eq.s32.totalorder %s26, 1
      %p44 = por %p42, %p43
      %p45 = scmp.ne.s32.totalorder %s34, %s35
      %p46 = scmp.eq.s32.totalorder %s26, 0
      %p47 = por %p45, %p46
      %p48 = scmp.ne.s32.totalorder %s34, %s35
      %p49 = scmp.eq.s32.totalorder %s27, 1
      %p50 = por %p48, %p49
      %p52 = scmp.ne.s32.totalorder %s35, %s51
      %p53 = scmp.eq.s32.totalorder %s27, 0
      %p54 = por %p52, %p53
      %s55 = ssub.s32 %s21, %s28
      %p56 = scmp.eq.s32.totalorder %s55, 0
      %s58 = sadd.s32 %s57, 1
      %s59 = scalar_select %p56, %s57, %s58
      %p62 = pneg %p56
      %p63 = scmp.eq.s32.totalorder %s21, 1
      %p64 = por %p62, %p63
      %p65 = scmp.ne.s32.totalorder %s57, %s60
      %p66 = scmp.eq.s32.totalorder %s21, 0
      %p67 = por %p65, %p66
      %p68 = scmp.ne.s32.totalorder %s57, %s60
      %p69 = scmp.eq.s32.totalorder %s26, 1
      %p70 = por %p68, %p69
      %p71 = scmp.ne.s32.totalorder %s60, %s61
      %p72 = scmp.eq.s32.totalorder %s26, 0
      %p73 = por %p71, %p72
      %p74 = scmp.ne.s32.totalorder %s60, %s61
      %p75 = scmp.eq.s32.totalorder %s27, 1
      %p76 = por %p74, %p75
      %p78 = scmp.ne.s32.totalorder %s61, %s77
      %p79 = scmp.eq.s32.totalorder %s27, 0
      %p80 = por %p78, %p79
      %s82 = sadd.s32 %s81, 1
      %p85 = scmp.eq.s32.totalorder %s21, 1
      %p86 = scmp.ne.s32.totalorder %s81, %s83
      %p87 = scmp.eq.s32.totalorder %s21, 0
      %p88 = por %p86, %p87
      %p89 = scmp.ne.s32.totalorder %s81, %s83
      %p90 = scmp.eq.s32.totalorder %s26, 1
      %p91 = por %p89, %p90
      %p92 = scmp.ne.s32.totalorder %s83, %s84
      %p93 = scmp.eq.s32.totalorder %s26, 0
      %p94 = por %p92, %p93
      %p95 = scmp.ne.s32.totalorder %s83, %s84
      %p96 = scmp.eq.s32.totalorder %s27, 1
      %p97 = por %p95, %p96
      %p99 = scmp.ne.s32.totalorder %s84, %s98
      %p100 = scmp.eq.s32.totalorder %s27, 0
      %p101 = por %p99, %p100
      %s102 = ssub.s32 %s21, %s28
      %p103 = scmp.eq.s32.totalorder %s102, 0
      %s105 = sadd.s32 %s104, 1
      %s106 = scalar_select %p103, %s104, %s105
      %p109 = pneg %p103
      %p110 = scmp.eq.s32.totalorder %s21, 1
      %p111 = por %p109, %p110
      %p112 = scmp.ne.s32.totalorder %s104, %s107
      %p113 = scmp.eq.s32.totalorder %s21, 0
      %p114 = por %p112, %p113
      %p115 = scmp.ne.s32.totalorder %s104, %s107
      %p116 = scmp.eq.s32.totalorder %s26, 1
      %p117 = por %p115, %p116
      %p118 = scmp.ne.s32.totalorder %s107, %s108
      %p119 = scmp.eq.s32.totalorder %s26, 0
      %p120 = por %p118, %p119
      %p121 = scmp.ne.s32.totalorder %s107, %s108
      %p122 = scmp.eq.s32.totalorder %s27, 1
      %p123 = por %p121, %p122
      %p125 = scmp.ne.s32.totalorder %s108, %s124
      %p126 = scmp.eq.s32.totalorder %s27, 0
      %p127 = por %p125, %p126
      %s128 = ssub.s32 %s21, %s28
      %p129 = scmp.eq.s32.totalorder %s128, 0
      %s131 = sadd.s32 %s130, 1
      %s132 = scalar_select %p129, %s130, %s131
      %p135 = pneg %p129
      %p136 = scmp.eq.s32.totalorder %s21, 1
      %p137 = por %p135, %p136
      %p138 = scmp.ne.s32.totalorder %s130, %s133
      %p139 = scmp.eq.s32.totalorder %s21, 0
      %p140 = por %p138, %p139
      %p141 = scmp.ne.s32.totalorder %s130, %s133
      %p142 = scmp.eq.s32.totalorder %s26, 1
      %p143 = por %p141, %p142
      %p144 = scmp.ne.s32.totalorder %s133, %s134
      %p145 = scmp.eq.s32.totalorder %s26, 0
      %p146 = por %p144, %p145
      %p147 = scmp.ne.s32.totalorder %s133, %s134
      %p148 = scmp.eq.s32.totalorder %s27, 1
      %p149 = por %p147, %p148
      %p151 = scmp.ne.s32.totalorder %s134, %s150
      %p152 = scmp.eq.s32.totalorder %s27, 0
      %p153 = por %p151, %p152
      %s155 = sadd.s32 %s154, 1
      %p158 = scmp.eq.s32.totalorder %s21, 1
      %p159 = scmp.ne.s32.totalorder %s154, %s156
      %p160 = scmp.eq.s32.totalorder %s21, 0
      %p161 = por %p159, %p160
      %p162 = scmp.ne.s32.totalorder %s154, %s156
      %p163 = scmp.eq.s32.totalorder %s26, 1
      %p164 = por %p162, %p163
      %p165 = scmp.ne.s32.totalorder %s156, %s157
      %p166 = scmp.eq.s32.totalorder %s26, 0
      %p167 = por %p165, %p166
      %p168 = scmp.ne.s32.totalorder %s156, %s157
      %p169 = scmp.eq.s32.totalorder %s27, 1
      %p170 = por %p168, %p169
      %p172 = scmp.ne.s32.totalorder %s157, %s171
      %p173 = scmp.eq.s32.totalorder %s27, 0
      %p174 = por %p172, %p173
      %s176 = sadd.s32 %s175, 1
      %p179 = scmp.eq.s32.totalorder %s21, 1
      %p180 = scmp.ne.s32.totalorder %s175, %s177
      %p181 = scmp.eq.s32.totalorder %s21, 0
      %p182 = por %p180, %p181
      %p183 = scmp.ne.s32.totalorder %s175, %s177
      %p184 = scmp.eq.s32.totalorder %s26, 1
      %p185 = por %p183, %p184
      %p186 = scmp.ne.s32.totalorder %s177, %s178
      %p187 = scmp.eq.s32.totalorder %s26, 0
      %p188 = por %p186, %p187
      %p189 = scmp.ne.s32.totalorder %s177, %s178
      %p190 = scmp.eq.s32.totalorder %s27, 1
      %p191 = por %p189, %p190
      %p193 = scmp.ne.s32.totalorder %s178, %s192
      %p194 = scmp.eq.s32.totalorder %s27, 0
      %p195 = por %p193, %p194
      %s197 = sadd.s32 %s196, 1
      %p200 = scmp.eq.s32.totalorder %s21, 1
      %p201 = scmp.ne.s32.totalorder %s196, %s198
      %p202 = scmp.eq.s32.totalorder %s21, 0
      %p203 = por %p201, %p202
      %p204 = scmp.ne.s32.totalorder %s196, %s198
      %p205 = scmp.eq.s32.totalorder %s26, 1
      %p206 = por %p204, %p205
      %p207 = scmp.ne.s32.totalorder %s198, %s199
      %p208 = scmp.eq.s32.totalorder %s26, 0
      %p209 = por %p207, %p208
      %p210 = scmp.ne.s32.totalorder %s198, %s199
      %p211 = scmp.eq.s32.totalorder %s27, 1
      %p212 = por %p210, %p211
      %p214 = scmp.ne.s32.totalorder %s199, %s213
      %p215 = scmp.eq.s32.totalorder %s27, 0
      %p216 = por %p214, %p215
      %s218 = sadd.s32 %s217, 1
      %p221 = scmp.eq.s32.totalorder %s21, 1
      %p222 = scmp.ne.s32.totalorder %s217, %s219
      %p223 = scmp.eq.s32.totalorder %s21, 0
      %p224 = por %p222, %p223
      %p225 = scmp.ne.s32.totalorder %s217, %s219
      %p226 = scmp.eq.s32.totalorder %s26, 1
      %p227 = por %p225, %p226
      %p228 = scmp.ne.s32.totalorder %s219, %s220
      %p229 = scmp.eq.s32.totalorder %s26, 0
      %p230 = por %p228, %p229
      %p231 = scmp.ne.s32.totalorder %s219, %s220
      %p232 = scmp.eq.s32.totalorder %s27, 1
      %p233 = por %p231, %p232
      %p235 = scmp.ne.s32.totalorder %s220, %s234
      %p236 = scmp.eq.s32.totalorder %s27, 0
      %p237 = por %p235, %p236
      %s239 = sadd.s32 %s238, 1
      %p242 = scmp.eq.s32.totalorder %s21, 1
      %p243 = scmp.ne.s32.totalorder %s238, %s240
      %p244 = scmp.eq.s32.totalorder %s21, 0
      %p245 = por %p243, %p244
      %p246 = scmp.ne.s32.totalorder %s238, %s240
      %p247 = scmp.eq.s32.totalorder %s26, 1
      %p248 = por %p246, %p247
      %p249 = scmp.ne.s32.totalorder %s240, %s241
      %p250 = scmp.eq.s32.totalorder %s26, 0
      %p251 = por %p249, %p250
      %p252 = scmp.ne.s32.totalorder %s240, %s241
      %p253 = scmp.eq.s32.totalorder %s27, 1
      %p254 = por %p252, %p253
      %p256 = scmp.ne.s32.totalorder %s241, %s255
      %p257 = scmp.eq.s32.totalorder %s27, 0
      %p258 = por %p256, %p257
      %s260 = sadd.s32 %s259, 1
      %p263 = scmp.eq.s32.totalorder %s21, 1
      %p264 = scmp.ne.s32.totalorder %s259, %s261
      %p265 = scmp.eq.s32.totalorder %s21, 0
      %p266 = por %p264, %p265
      %p267 = scmp.ne.s32.totalorder %s259, %s261
      %p268 = scmp.eq.s32.totalorder %s26, 1
      %p269 = por %p267, %p268
      %p270 = scmp.ne.s32.totalorder %s261, %s262
      %p271 = scmp.eq.s32.totalorder %s26, 0
      %p272 = por %p270, %p271
      %p273 = scmp.ne.s32.totalorder %s261, %s262
      %p274 = scmp.eq.s32.totalorder %s27, 1
      %p275 = por %p273, %p274
      %p277 = scmp.ne.s32.totalorder %s262, %s276
      %p278 = scmp.eq.s32.totalorder %s27, 0
      %p279 = por %p277, %p278
      %s281 = sadd.s32 %s280, 1
      %p284 = scmp.eq.s32.totalorder %s21, 1
      %p285 = scmp.ne.s32.totalorder %s280, %s282
      %p286 = scmp.eq.s32.totalorder %s21, 0
      %p287 = por %p285, %p286
      %p288 = scmp.ne.s32.totalorder %s280, %s282
      %p289 = scmp.eq.s32.totalorder %s26, 1
      %p290 = por %p288, %p289
      %p291 = scmp.ne.s32.totalorder %s282, %s283
      %p292 = scmp.eq.s32.totalorder %s26, 0
      %p293 = por %p291, %p292
      %p294 = scmp.ne.s32.totalorder %s282, %s283
      %p295 = scmp.eq.s32.totalorder %s27, 1
      %p296 = por %p294, %p295
      %p298 = scmp.ne.s32.totalorder %s283, %s297
      %p299 = scmp.eq.s32.totalorder %s27, 0
      %p300 = por %p298, %p299
      %s301 = ssub.s32 %s21, %s28
      %p302 = scmp.eq.s32.totalorder %s301, 0
      %s304 = sadd.s32 %s303, 1
      %s305 = scalar_select %p302, %s303, %s304
      %p308 = pneg %p302
      %p309 = scmp.eq.s32.totalorder %s21, 1
      %p310 = por %p308, %p309
      %p311 = scmp.ne.s32.totalorder %s303, %s306
      %p312 = scmp.eq.s32.totalorder %s21, 0
      %p313 = por %p311, %p312
      %p314 = scmp.ne.s32.totalorder %s303, %s306
      %p315 = scmp.eq.s32.totalorder %s26, 1
      %p316 = por %p314, %p315
      %p317 = scmp.ne.s32.totalorder %s306, %s307
      %p318 = scmp.eq.s32.totalorder %s26, 0
      %p319 = por %p317, %p318
      %p320 = scmp.ne.s32.totalorder %s306, %s307
      %p321 = scmp.eq.s32.totalorder %s27, 1
      %p322 = por %p320, %p321
      %p324 = scmp.ne.s32.totalorder %s307, %s323
      %p325 = scmp.eq.s32.totalorder %s27, 0
      %p326 = por %p324, %p325
      %p327 = scmp.le.s32.totalorder 1, %s21
      %p328 = scmp.lt.s32.totalorder %s21, 3
      %p329 = pnand %p327, %p328
      %p330 = pneg %p329
      // Predicated region
      $region9: #{tpu_custom_call.1} parent=5 // pred_check
        _
      $region10: #{tpu_custom_call.1} parent=5 // pred_check_branch
        %332 = sbr.rel (%p329) target = $region12
      $region11: #{tpu_custom_call.1} parent=5 // pred_region
        %s333 = ssub.s32 %s21, 1
        // Predicated region
        $region13: #{tpu_custom_call.1} parent=11 // pred_check
          %p334 = pneg %p94
        $region14: #{tpu_custom_call.1} parent=11 // pred_check_branch
          %336 = sbr.rel (%p334) target = $region16
        $region15: #{tpu_custom_call.1} parent=11 // pred_region
          _
        $region16: #{tpu_custom_call.1} parent=11 // pred_fallthru
          _
        // Predicated region
        $region17: #{tpu_custom_call.1} parent=11 // pred_check
          %p337 = pneg %p167
        $region18: #{tpu_custom_call.1} parent=11 // pred_check_branch
          %339 = sbr.rel (%p337) target = $region20
        $region19: #{tpu_custom_call.1} parent=11 // pred_region
          _
        $region20: #{tpu_custom_call.1} parent=11 // pred_fallthru
          _
        // Predicated region
        $region21: #{tpu_custom_call.1} parent=11 // pred_check
          %p340 = pneg %p188
        $region22: #{tpu_custom_call.1} parent=11 // pred_check_branch
          %342 = sbr.rel (%p340) target = $region24
        $region23: #{tpu_custom_call.1} parent=11 // pred_region
          _
        $region24: #{tpu_custom_call.1} parent=11 // pred_fallthru
          _
        // Predicated region
        $region25: #{tpu_custom_call.1} parent=11 // pred_check
          %p343 = pneg %p209
        $region26: #{tpu_custom_call.1} parent=11 // pred_check_branch
          %345 = sbr.rel (%p343) target = $region28
        $region27: #{tpu_custom_call.1} parent=11 // pred_region
          _
        $region28: #{tpu_custom_call.1} parent=11 // pred_fallthru
          _
        // Predicated region
        $region29: #{tpu_custom_call.1} parent=11 // pred_check
          %p346 = pneg %p230
        $region30: #{tpu_custom_call.1} parent=11 // pred_check_branch
          %348 = sbr.rel (%p346) target = $region32
        $region31: #{tpu_custom_call.1} parent=11 // pred_region
          _
        $region32: #{tpu_custom_call.1} parent=11 // pred_fallthru
          _
        // Predicated region
        $region33: #{tpu_custom_call.1} parent=11 // pred_check
          %p349 = pneg %p251
        $region34: #{tpu_custom_call.1} parent=11 // pred_check_branch
          %351 = sbr.rel (%p349) target = $region36
        $region35: #{tpu_custom_call.1} parent=11 // pred_region
          _
        $region36: #{tpu_custom_call.1} parent=11 // pred_fallthru
          _
        // Predicated region
        $region37: #{tpu_custom_call.1} parent=11 // pred_check
          %p352 = pneg %p272
        $region38: #{tpu_custom_call.1} parent=11 // pred_check_branch
          %354 = sbr.rel (%p352) target = $region40
        $region39: #{tpu_custom_call.1} parent=11 // pred_region
          _
        $region40: #{tpu_custom_call.1} parent=11 // pred_fallthru
          _
        // Predicated region
        $region41: #{tpu_custom_call.1} parent=11 // pred_check
          %p355 = pneg %p293
        $region42: #{tpu_custom_call.1} parent=11 // pred_check_branch
          %357 = sbr.rel (%p355) target = $region44
        $region43: #{tpu_custom_call.1} parent=11 // pred_region
          _
        $region44: #{tpu_custom_call.1} parent=11 // pred_fallthru
          _
      $region12: #{tpu_custom_call.1} parent=5 // pred_fallthru
        _
      %p358 = scmp.lt.s32.totalorder %s21, 2
      // Predicated region
      $region45: #{tpu_custom_call.1} parent=5 // pred_check
        %p359 = pneg %p358
      $region46: #{tpu_custom_call.1} parent=5 // pred_check_branch
        %361 = sbr.rel (%p359) target = $region48
      $region47: #{tpu_custom_call.1} parent=5 // pred_region
        // Predicated region
        $region49: #{tpu_custom_call.1} parent=47 // pred_check
          %p362 = pneg %p41
        $region50: #{tpu_custom_call.1} parent=47 // pred_check_branch
          %364 = sbr.rel (%p362) target = $region52
        $region51: #{tpu_custom_call.1} parent=47 // pred_region
          %p365 = scmp.lt.s32.totalorder %s21, 1
          %s366 = scalar_select %p365, %s21, 1
          %s367 = smul.addr %s366, 8
          %s368 = smul.addr %s367, 4
          %s369 = scalar_lea.vmem %s0, %s368
        $region52: #{tpu_custom_call.1} parent=47 // pred_fallthru
          _
        // Predicated region
        $region53: #{tpu_custom_call.1} parent=47 // pred_check
          %p370 = pneg %p67
        $region54: #{tpu_custom_call.1} parent=47 // pred_check_branch
          %372 = sbr.rel (%p370) target = $region56
        $region55: #{tpu_custom_call.1} parent=47 // pred_region
          %p373 = scmp.lt.s32.totalorder %s21, 1
          %s374 = scalar_select %p373, %s21, 1
          %s375 = smul.addr %s374, 2
          %s376 = smul.addr %s375, 4
          %s377 = scalar_lea.vmem %s1, %s376
        $region56: #{tpu_custom_call.1} parent=47 // pred_fallthru
          _
        // Predicated region
        $region57: #{tpu_custom_call.1} parent=47 // pred_check
          %p378 = pneg %p114
        $region58: #{tpu_custom_call.1} parent=47 // pred_check_branch
          %380 = sbr.rel (%p378) target = $region60
        $region59: #{tpu_custom_call.1} parent=47 // pred_region
          %p381 = scmp.lt.s32.totalorder %s21, 1
          %s382 = scalar_select %p381, %s21, 1
          %s383 = smul.addr %s382, 4
          %s384 = smul.addr %s383, 4
          %s385 = scalar_lea.vmem %s3, %s384
        $region60: #{tpu_custom_call.1} parent=47 // pred_fallthru
          _
        // Predicated region
        $region61: #{tpu_custom_call.1} parent=47 // pred_check
          %p386 = pneg %p140
        $region62: #{tpu_custom_call.1} parent=47 // pred_check_branch
          %388 = sbr.rel (%p386) target = $region64
        $region63: #{tpu_custom_call.1} parent=47 // pred_region
          %p389 = scmp.lt.s32.totalorder %s21, 1
          %s390 = scalar_select %p389, %s21, 1
          %s391 = smul.addr %s390, 4
          %s392 = smul.addr %s391, 4
          %s393 = scalar_lea.vmem %s4, %s392
        $region64: #{tpu_custom_call.1} parent=47 // pred_fallthru
          _
      $region48: #{tpu_custom_call.1} parent=5 // pred_fallthru
        _
      %p394 = scmp.le.s32.totalorder 1, %s21
      %p395 = scmp.lt.s32.totalorder %s21, 3
      %p396 = pnand %p394, %p395
      %p397 = pneg %p396
      // Predicated region
      $region65: #{tpu_custom_call.1} parent=5 // pred_check
        _
      $region66: #{tpu_custom_call.1} parent=5 // pred_check_branch
        %399 = sbr.rel (%p396) target = $region68
      $region67: #{tpu_custom_call.1} parent=5 // pred_region
        %s400 = ssub.s32 %s21, 1
        %p401 = scmp.lt.s32.totalorder %s26, 1
        %s402 = scalar_select %p401, %s26, 1
        %s403 = smul.addr %s402, 8
        %s404 = smul.addr %s403, 4
        %s405 = scalar_lea.vmem %s0, %s404
        %p406 = pneg %p47
        %p407 = pneg %p44
        %p408 = scmp.lt.s32.totalorder %s26, 1
        %s409 = scalar_select %p408, %s26, 1
        %s410 = smul.addr %s409, 2
        %s411 = smul.addr %s410, 4
        %s412 = scalar_lea.vmem %s1, %s411
        %p413 = pneg %p73
        %p414 = pneg %p70
        %p415 = pneg %p94
        %p416 = pneg %p91
        %p417 = scmp.lt.s32.totalorder %s26, 1
        %s418 = scalar_select %p417, %s26, 1
        %s419 = smul.addr %s418, 4
        %s420 = smul.addr %s419, 4
        %s421 = scalar_lea.vmem %s3, %s420
        %p422 = pneg %p120
        %p423 = pneg %p117
        %p424 = scmp.lt.s32.totalorder %s26, 1
        %s425 = scalar_select %p424, %s26, 1
        %s426 = smul.addr %s425, 4
        %s427 = smul.addr %s426, 4
        %s428 = scalar_lea.vmem %s4, %s427
        %p429 = pneg %p146
        %p430 = pneg %p143
        %p431 = pneg %p167
        %p432 = pneg %p164
        %p433 = pneg %p188
        %p434 = pneg %p185
        %p435 = pneg %p209
        %p436 = pneg %p206
        %p437 = pneg %p230
        %p438 = pneg %p227
        %p439 = pneg %p251
        %p440 = pneg %p248
        %p441 = pneg %p272
        %p442 = pneg %p269
        %p443 = pneg %p293
        %p444 = pneg %p290
        %p445 = pneg %p319
        %p446 = pneg %p316
        %s447 = sand.u32 %s306, 1
        %s448 = scalar_lea.sflag [#allocation3], %s447
        %s449 = sand.u32 %s306, 1
        %s450 = smul.addr %s449, 32
        %s451 = scalar_lea.vmem [#allocation2], %s450
        %p452 = scmp.lt.s32.totalorder %s26, 1
        %s453 = scalar_select %p452, %s26, 1
        %s454 = smul.addr %s453, 8
        %s455 = smul.addr %s454, 4
        %s456 = scalar_lea.vmem %s0, %s455
        %p457 = scmp.lt.s32.totalorder %s26, 1
        %s458 = scalar_select %p457, %s26, 1
        %s459 = smul.addr %s458, 2
        %s460 = smul.addr %s459, 4
        %s461 = scalar_lea.vmem %s1, %s460
        %p462 = scmp.lt.s32.totalorder %s26, 1
        %s463 = scalar_select %p462, %s26, 1
        %s464 = smul.addr %s463, 4
        %s465 = smul.addr %s464, 4
        %s466 = scalar_lea.vmem %s3, %s465
        %p467 = scmp.lt.s32.totalorder %s26, 1
        %s468 = scalar_select %p467, %s26, 1
        %s469 = smul.addr %s468, 4
        %s470 = smul.addr %s469, 4
        %s471 = scalar_lea.vmem %s4, %s470
        %v473 = vld [vmem:[%s456] sm:$0xff]
        %v474 = vld [vmem:[%s456 + $0x8] sm:$0xff]
        %v475 = vld [vmem:[%s456 + $0x10] sm:$0xff]
        %v476 = vld [vmem:[%s456 + $0x18] sm:$0xff]
        %v477 = vunpack.c.l.bf16 %v473
        %v478 = vunpack.c.h.bf16 %v473
        %v479 = vunpack.c.l.bf16 %v474
        %v480 = vunpack.c.h.bf16 %v474
        %v481 = vunpack.c.l.bf16 %v475
        %v482 = vunpack.c.h.bf16 %v475
        %v483 = vunpack.c.l.bf16 %v476
        %v484 = vunpack.c.h.bf16 %v476
        %v485 = vadd.f32 %v477, %v478
        %486 = vadd.xlane.f32.xlu0 %v485
        %v487 = vpop.xlane.xlu0 %486
        %v488 = vadd.f32 %v479, %v480
        %489 = vadd.xlane.f32.xlu0 %v488
        %v490 = vpop.xlane.xlu0 %489
        %v491 = vadd.f32 %v481, %v482
        %492 = vadd.xlane.f32.xlu0 %v491
        %v493 = vpop.xlane.xlu0 %492
        %v494 = vadd.f32 %v483, %v484
        %495 = vadd.xlane.f32.xlu0 %v494
        %v496 = vpop.xlane.xlu0 %495
        %v497 = vrcp.pop 256.0
        %v498 = vmul.f32 256.0, %v497
        %v499 = vsub.f32 1.0, %v498
        %v500 = vmul.f32 %v497, %v499
        %v501 = vadd.f32 %v497, %v500
        %vm502 = vweird.f32 %v497
        %v503 = vsel %vm502, %v497, %v501
        %v504 = vmul.f32 %v487, %v503
        %v505 = vmul.f32 %v490, %v503
        %v506 = vmul.f32 %v493, %v503
        %v507 = vmul.f32 %v496, %v503
        %v508 = vsub.f32 %v477, %v504
        %v509 = vsub.f32 %v478, %v504
        %v510 = vsub.f32 %v479, %v505
        %v511 = vsub.f32 %v480, %v505
        %v512 = vsub.f32 %v481, %v506
        %v513 = vsub.f32 %v482, %v506
        %v514 = vsub.f32 %v483, %v507
        %v515 = vsub.f32 %v484, %v507
        %v516 = vmul.f32 %v508, %v508
        %v517 = vmul.f32 %v509, %v509
        %v518 = vmul.f32 %v510, %v510
        %v519 = vmul.f32 %v511, %v511
        %v520 = vmul.f32 %v512, %v512
        %v521 = vmul.f32 %v513, %v513
        %v522 = vmul.f32 %v514, %v514
        %v523 = vmul.f32 %v515, %v515
        %v524 = vadd.f32 %v516, %v517
        %525 = vadd.xlane.f32.xlu0 %v524
        %v526 = vpop.xlane.xlu0 %525
        %v527 = vadd.f32 %v518, %v519
        %528 = vadd.xlane.f32.xlu0 %v527
        %v529 = vpop.xlane.xlu0 %528
        %v530 = vadd.f32 %v520, %v521
        %531 = vadd.xlane.f32.xlu0 %v530
        %v532 = vpop.xlane.xlu0 %531
        %v533 = vadd.f32 %v522, %v523
        %534 = vadd.xlane.f32.xlu0 %v533
        %v535 = vpop.xlane.xlu0 %534
        %v536 = vmul.f32 %v526, %v503
        %v537 = vmul.f32 %v529, %v503
        %v538 = vmul.f32 %v532, %v503
        %v539 = vmul.f32 %v535, %v503
        %v540 = vadd.f32 %v536, 1e-05
        %v541 = vadd.f32 %v537, 1e-05
        %v542 = vadd.f32 %v538, 1e-05
        %v543 = vadd.f32 %v539, 1e-05
        %v544 = vrsqrt.pop %v540
        %v545 = vmul.f32 %v544, %v540
        %v546 = vmul.f32 %v545, %v544
        %v547 = vmul.f32 0.5, %v546
        %v548 = vsub.f32 1.5, %v547
        %v549 = vmul.f32 %v544, %v548
        %vm550 = vweird.f32 %v540
        %vm551 = vweird.f32 %v544
        %vm552 = vmor %vm550, %vm551
        %v553 = vsel %vm552, %v544, %v549
        %v554 = vrsqrt.pop %v541
        %v555 = vmul.f32 %v554, %v541
        %v556 = vmul.f32 %v555, %v554
        %v557 = vmul.f32 0.5, %v556
        %v558 = vsub.f32 1.5, %v557
        %v559 = vmul.f32 %v554, %v558
        %vm560 = vweird.f32 %v541
        %vm561 = vweird.f32 %v554
        %vm562 = vmor %vm560, %vm561
        %v563 = vsel %vm562, %v554, %v559
        %v564 = vrsqrt.pop %v542
        %v565 = vmul.f32 %v564, %v542
        %v566 = vmul.f32 %v565, %v564
        %v567 = vmul.f32 0.5, %v566
        %v568 = vsub.f32 1.5, %v567
        %v569 = vmul.f32 %v564, %v568
        %vm570 = vweird.f32 %v542
        %vm571 = vweird.f32 %v564
        %vm572 = vmor %vm570, %vm571
        %v573 = vsel %vm572, %v564, %v569
        %v574 = vrsqrt.pop %v543
        %v575 = vmul.f32 %v574, %v543
        %v576 = vmul.f32 %v575, %v574
        %v577 = vmul.f32 0.5, %v576
        %v578 = vsub.f32 1.5, %v577
        %v579 = vmul.f32 %v574, %v578
        %vm580 = vweird.f32 %v543
        %vm581 = vweird.f32 %v574
        %vm582 = vmor %vm580, %vm581
        %v583 = vsel %vm582, %v574, %v579
        %v584 = vmul.f32 %v508, %v553
        %v585 = vmul.f32 %v509, %v553
        %v586 = vmul.f32 %v510, %v563
        %v587 = vmul.f32 %v511, %v563
        %v588 = vmul.f32 %v512, %v573
        %v589 = vmul.f32 %v513, %v573
        %v590 = vmul.f32 %v514, %v583
        %v591 = vmul.f32 %v515, %v583
        %v592 = vld [vmem:[%s2] sm:$0x3]
        %v593 = vunpack.c.l.bf16 %v592
        %v594 = vld [vmem:[%s9] sm:$0xff]
        %v595 = vld [vmem:[%s9 + $0x8] sm:$0xff]
        %v596 = vld [vmem:[%s9 + $0x10] sm:$0xff]
        %v597 = vld [vmem:[%s9 + $0x18] sm:$0xff]
        %599 = vset.pattern.permute.xlu0 0
        %600 = vperm.xlu0 %599, %v594
        %v601 = vpop.permute.xlu0 %600
        %604 = vset.pattern.permute.xlu0 0
        %605 = vperm.xlu0 %604, %v595
        %v606 = vpop.permute.xlu0 %605
        %609 = vset.pattern.permute.xlu0 0
        %610 = vperm.xlu0 %609, %v596
        %v611 = vpop.permute.xlu0 %610
        %614 = vset.pattern.permute.xlu0 0
        %615 = vperm.xlu0 %614, %v597
        %v616 = vpop.permute.xlu0 %615
        %v619 = vperm.slane %v593, 0
        %v620 = vperm.slane %v593, 2
        %v623 = vperm.slane %v619, 0
        %v624 = vperm.slane %v620, 0
        %v625 = vmul.f32 %v601, %v623
        %v626 = vmul.f32 %v601, %v624
        %v627 = vmul.f32 %v606, %v623
        %v628 = vmul.f32 %v606, %v624
        %v629 = vmul.f32 %v611, %v623
        %v630 = vmul.f32 %v611, %v624
        %v631 = vmul.f32 %v616, %v623
        %v632 = vmul.f32 %v616, %v624
        %633 = vset.pattern.permute.xlu0 1
        %634 = vperm.xlu0 %633, %v594
        %v635 = vpop.permute.xlu0 %634
        %637 = vset.pattern.permute.xlu0 1
        %638 = vperm.xlu0 %637, %v595
        %v639 = vpop.permute.xlu0 %638
        %641 = vset.pattern.permute.xlu0 1
        %642 = vperm.xlu0 %641, %v596
        %v643 = vpop.permute.xlu0 %642
        %645 = vset.pattern.permute.xlu0 1
        %646 = vperm.xlu0 %645, %v597
        %v647 = vpop.permute.xlu0 %646
        %v649 = vperm.slane %v593, 1
        %v650 = vperm.slane %v593, 3
        %v653 = vperm.slane %v649, 1
        %v654 = vperm.slane %v650, 1
        %v655 = vmul.f32 %v635, %v653
        %v656 = vmul.f32 %v635, %v654
        %v657 = vmul.f32 %v639, %v653
        %v658 = vmul.f32 %v639, %v654
        %v659 = vmul.f32 %v643, %v653
        %v660 = vmul.f32 %v643, %v654
        %v661 = vmul.f32 %v647, %v653
        %v662 = vmul.f32 %v647, %v654
        %v663 = vadd.f32 %v625, %v655
        %v664 = vadd.f32 %v626, %v656
        %v665 = vadd.f32 %v627, %v657
        %v666 = vadd.f32 %v628, %v658
        %v667 = vadd.f32 %v629, %v659
        %v668 = vadd.f32 %v630, %v660
        %v669 = vadd.f32 %v631, %v661
        %v670 = vadd.f32 %v632, %v662
        %v671 = vld [vmem:[%s10] sm:$0xff]
        %v672 = vld [vmem:[%s10 + $0x8] sm:$0xff]
        %v673 = vld [vmem:[%s10 + $0x10] sm:$0xff]
        %v674 = vld [vmem:[%s10 + $0x18] sm:$0xff]
        %676 = vset.pattern.permute.xlu0 0
        %677 = vperm.xlu0 %676, %v671
        %v678 = vpop.permute.xlu0 %677
        %681 = vset.pattern.permute.xlu0 0
        %682 = vperm.xlu0 %681, %v672
        %v683 = vpop.permute.xlu0 %682
        %686 = vset.pattern.permute.xlu0 0
        %687 = vperm.xlu0 %686, %v673
        %v688 = vpop.permute.xlu0 %687
        %691 = vset.pattern.permute.xlu0 0
        %692 = vperm.xlu0 %691, %v674
        %v693 = vpop.permute.xlu0 %692
        %v695 = vadd.f32 %v663, %v678
        %v696 = vadd.f32 %v664, %v678
        %v697 = vadd.f32 %v665, %v683
        %v698 = vadd.f32 %v666, %v683
        %v699 = vadd.f32 %v667, %v688
        %v700 = vadd.f32 %v668, %v688
        %v701 = vadd.f32 %v669, %v693
        %v702 = vadd.f32 %v670, %v693
        %v703 = vld [vmem:[%s461] sm:$0xff]
        %v704 = vld [vmem:[%s5] sm:$0xf]
        %v705 = vld [vmem:[%s5 + $0x4] sm:$0xf]
        %v706 = vld [vmem:[%s5 + $0x8] sm:$0xf]
        %v707 = vld [vmem:[%s5 + $0xc] sm:$0xf]
        %v708 = vld [vmem:[%s5 + $0x10] sm:$0xf]
        %v709 = vld [vmem:[%s5 + $0x14] sm:$0xf]
        %v710 = vld [vmem:[%s5 + $0x18] sm:$0xf]
        %v711 = vld [vmem:[%s5 + $0x1c] sm:$0xf]
        %v712 = vld [vmem:[%s5 + $0x20] sm:$0xf]
        %v713 = vld [vmem:[%s5 + $0x24] sm:$0xf]
        %v714 = vld [vmem:[%s5 + $0x28] sm:$0xf]
        %v715 = vld [vmem:[%s5 + $0x2c] sm:$0xf]
        %v716 = vld [vmem:[%s5 + $0x30] sm:$0xf]
        %v717 = vld [vmem:[%s5 + $0x34] sm:$0xf]
        %v718 = vld [vmem:[%s5 + $0x38] sm:$0xf]
        %v719 = vld [vmem:[%s5 + $0x3c] sm:$0xf]
        %v720 = vld [vmem:[%s6] sm:$0xff]
        %v721 = vld [vmem:[%s6 + $0x8] sm:$0xff]
        %v722 = vld [vmem:[%s6 + $0x10] sm:$0xff]
        %v723 = vld [vmem:[%s6 + $0x18] sm:$0xff]
        %v724 = vld [vmem:[%s6 + $0x20] sm:$0xff]
        %v725 = vld [vmem:[%s6 + $0x28] sm:$0xff]
        %v726 = vld [vmem:[%s6 + $0x30] sm:$0xff]
        %v727 = vld [vmem:[%s6 + $0x38] sm:$0xff]
        %v728 = vld [vmem:[%s6 + $0x40] sm:$0xff]
        %v729 = vld [vmem:[%s6 + $0x48] sm:$0xff]
        %v730 = vld [vmem:[%s6 + $0x50] sm:$0xff]
        %v731 = vld [vmem:[%s6 + $0x58] sm:$0xff]
        %v732 = vld [vmem:[%s6 + $0x60] sm:$0xff]
        %v733 = vld [vmem:[%s6 + $0x68] sm:$0xff]
        %v734 = vld [vmem:[%s6 + $0x70] sm:$0xff]
        %v735 = vld [vmem:[%s6 + $0x78] sm:$0xff]
        %737 = vset.pattern.permute.xlu0 0
        %738 = vperm.xlu0 %737, %v720
        %v739 = vpop.permute.xlu0 %738
        %742 = vset.pattern.permute.xlu0 0
        %743 = vperm.xlu0 %742, %v721
        %v744 = vpop.permute.xlu0 %743
        %747 = vset.pattern.permute.xlu0 0
        %748 = vperm.xlu0 %747, %v722
        %v749 = vpop.permute.xlu0 %748
        %752 = vset.pattern.permute.xlu0 0
        %753 = vperm.xlu0 %752, %v723
        %v754 = vpop.permute.xlu0 %753
        %757 = vset.pattern.permute.xlu0 0
        %758 = vperm.xlu0 %757, %v724
        %v759 = vpop.permute.xlu0 %758
        %762 = vset.pattern.permute.xlu0 0
        %763 = vperm.xlu0 %762, %v725
        %v764 = vpop.permute.xlu0 %763
        %767 = vset.pattern.permute.xlu0 0
        %768 = vperm.xlu0 %767, %v726
        %v769 = vpop.permute.xlu0 %768
        %772 = vset.pattern.permute.xlu0 0
        %773 = vperm.xlu0 %772, %v727
        %v774 = vpop.permute.xlu0 %773
        %777 = vset.pattern.permute.xlu0 0
        %778 = vperm.xlu0 %777, %v728
        %v779 = vpop.permute.xlu0 %778
        %782 = vset.pattern.permute.xlu0 0
        %783 = vperm.xlu0 %782, %v729
        %v784 = vpop.permute.xlu0 %783
        %787 = vset.pattern.permute.xlu0 0
        %788 = vperm.xlu0 %787, %v730
        %v789 = vpop.permute.xlu0 %788
        %792 = vset.pattern.permute.xlu0 0
        %793 = vperm.xlu0 %792, %v731
        %v794 = vpop.permute.xlu0 %793
        %797 = vset.pattern.permute.xlu0 0
        %798 = vperm.xlu0 %797, %v732
        %v799 = vpop.permute.xlu0 %798
        %802 = vset.pattern.permute.xlu0 0
        %803 = vperm.xlu0 %802, %v733
        %v804 = vpop.permute.xlu0 %803
        %807 = vset.pattern.permute.xlu0 0
        %808 = vperm.xlu0 %807, %v734
        %v809 = vpop.permute.xlu0 %808
        %812 = vset.pattern.permute.xlu0 0
        %813 = vperm.xlu0 %812, %v735
        %v814 = vpop.permute.xlu0 %813
        %v832 = vunpack.c.l.b16 %v704
        %v833 = vunpack.c.l.b16 %v705
        %v834 = vunpack.c.l.b16 %v706
        %v835 = vunpack.c.l.b16 %v707
        %v836 = vunpack.c.l.b16 %v708
        %v837 = vunpack.c.l.b16 %v709
        %v838 = vunpack.c.l.b16 %v710
        %v839 = vunpack.c.l.b16 %v711
        %v840 = vunpack.c.l.b16 %v712
        %v841 = vunpack.c.l.b16 %v713
        %v842 = vunpack.c.l.b16 %v714
        %v843 = vunpack.c.l.b16 %v715
        %v844 = vunpack.c.l.b16 %v716
        %v845 = vunpack.c.l.b16 %v717
        %v846 = vunpack.c.l.b16 %v718
        %v847 = vunpack.c.l.b16 %v719
        %v848 = vpack.c.b16 %v833, %v832
        %v849 = vpack.c.b16 %v835, %v834
        %v850 = vpack.c.b16 %v837, %v836
        %v851 = vpack.c.b16 %v839, %v838
        %v852 = vpack.c.b16 %v841, %v840
        %v853 = vpack.c.b16 %v843, %v842
        %v854 = vpack.c.b16 %v845, %v844
        %v855 = vpack.c.b16 %v847, %v846
        %v857 = vunpack.c.l.b16 %v703
        %v858 = vunpack.c.h.b16 %v703
        %v859 = vpack.c.b16 %v857, %v857
        %v860 = vpack.c.b16 %v858, %v858
        %vm861 = vcmask 64512
        %v863 = vsel %vm861, %v848, 0
        %v866 = vsel %vm861, %v849, 0
        %v869 = vsel %vm861, %v850, 0
        %v872 = vsel %vm861, %v851, 0
        %v875 = vsel %vm861, %v852, 0
        %v878 = vsel %vm861, %v853, 0
        %v881 = vsel %vm861, %v854, 0
        %v884 = vsel %vm861, %v855, 0
        %vm886 = vcmask 1043456
        %v888 = vsel %vm886, %v859, 0
        %v891 = vsel %vm886, %v860, 0
        %893 = vmatpush.bf16.msra.mxu0 0
        %894 = vmatpush.bf16.msra.mxu0 0
        %895 = vmatpush.bf16.msra.mxu0 0
        %896 = vmatpush.bf16.msra.mxu0 0
        %897 = vmatpush.bf16.msra.mxu0 0
        %898 = vmatpush.bf16.msra.mxu0 0
        %899 = vmatpush.bf16.msra.mxu0 0
        %900 = vmatpush.bf16.msra.mxu0 %v888
        %901 = vmatmul.bf16.gmra.mxu0 %v863
        %v902 = vpop.f32.mrf.mxu0
        %v903 = vadd.f32 %v739, %v902
        %v904 = vpop.f32.mrf.mxu0
        %v905 = vadd.f32 %v744, %v904
        %906 = vmatmul.bf16.gmra.mxu0 %v866
        %v907 = vpop.f32.mrf.mxu0
        %v908 = vadd.f32 %v749, %v907
        %v909 = vpop.f32.mrf.mxu0
        %v910 = vadd.f32 %v754, %v909
        %911 = vmatmul.bf16.gmra.mxu0 %v869
        %v912 = vpop.f32.mrf.mxu0
        %v913 = vadd.f32 %v759, %v912
        %v914 = vpop.f32.mrf.mxu0
        %v915 = vadd.f32 %v764, %v914
        %916 = vmatmul.bf16.gmra.mxu0 %v872
        %v917 = vpop.f32.mrf.mxu0
        %v918 = vadd.f32 %v769, %v917
        %v919 = vpop.f32.mrf.mxu0
        %v920 = vadd.f32 %v774, %v919
        %921 = vmatmul.bf16.gmra.mxu0 %v875
        %v922 = vpop.f32.mrf.mxu0
        %v923 = vadd.f32 %v779, %v922
        %v924 = vpop.f32.mrf.mxu0
        %v925 = vadd.f32 %v784, %v924
        %926 = vmatmul.bf16.gmra.mxu0 %v878
        %v927 = vpop.f32.mrf.mxu0
        %v928 = vadd.f32 %v789, %v927
        %v929 = vpop.f32.mrf.mxu0
        %v930 = vadd.f32 %v794, %v929
        %931 = vmatmul.bf16.gmra.mxu0 %v881
        %v932 = vpop.f32.mrf.mxu0
        %v933 = vadd.f32 %v799, %v932
        %v934 = vpop.f32.mrf.mxu0
        %v935 = vadd.f32 %v804, %v934
        %936 = vmatmul.bf16.gmra.mxu0 %v884
        %v937 = vpop.f32.mrf.mxu0
        %v938 = vadd.f32 %v809, %v937
        %v939 = vpop.f32.mrf.mxu0
        %v940 = vadd.f32 %v814, %v939
        %941 = vdwg.mxu0
        %942 = vmatpush.bf16.msra.mxu0 0
        %943 = vmatpush.bf16.msra.mxu0 0
        %944 = vmatpush.bf16.msra.mxu0 0
        %945 = vmatpush.bf16.msra.mxu0 0
        %946 = vmatpush.bf16.msra.mxu0 0
        %947 = vmatpush.bf16.msra.mxu0 0
        %948 = vmatpush.bf16.msra.mxu0 0
        %949 = vmatpush.bf16.msra.mxu0 %v891
        %950 = vmatmul.bf16.gmra.mxu0 %v863
        %v951 = vpop.f32.mrf.mxu0
        %v952 = vadd.f32 %v739, %v951
        %v953 = vpop.f32.mrf.mxu0
        %v954 = vadd.f32 %v744, %v953
        %955 = vmatmul.bf16.gmra.mxu0 %v866
        %v956 = vpop.f32.mrf.mxu0
        %v957 = vadd.f32 %v749, %v956
        %v958 = vpop.f32.mrf.mxu0
        %v959 = vadd.f32 %v754, %v958
        %960 = vmatmul.bf16.gmra.mxu0 %v869
        %v961 = vpop.f32.mrf.mxu0
        %v962 = vadd.f32 %v759, %v961
        %v963 = vpop.f32.mrf.mxu0
        %v964 = vadd.f32 %v764, %v963
        %965 = vmatmul.bf16.gmra.mxu0 %v872
        %v966 = vpop.f32.mrf.mxu0
        %v967 = vadd.f32 %v769, %v966
        %v968 = vpop.f32.mrf.mxu0
        %v969 = vadd.f32 %v774, %v968
        %970 = vmatmul.bf16.gmra.mxu0 %v875
        %v971 = vpop.f32.mrf.mxu0
        %v972 = vadd.f32 %v779, %v971
        %v973 = vpop.f32.mrf.mxu0
        %v974 = vadd.f32 %v784, %v973
        %975 = vmatmul.bf16.gmra.mxu0 %v878
        %v976 = vpop.f32.mrf.mxu0
        %v977 = vadd.f32 %v789, %v976
        %v978 = vpop.f32.mrf.mxu0
        %v979 = vadd.f32 %v794, %v978
        %980 = vmatmul.bf16.gmra.mxu0 %v881
        %v981 = vpop.f32.mrf.mxu0
        %v982 = vadd.f32 %v799, %v981
        %v983 = vpop.f32.mrf.mxu0
        %v984 = vadd.f32 %v804, %v983
        %985 = vmatmul.bf16.gmra.mxu0 %v884
        %v986 = vpop.f32.mrf.mxu0
        %v987 = vadd.f32 %v809, %v986
        %v988 = vpop.f32.mrf.mxu0
        %v989 = vadd.f32 %v814, %v988
        %990 = vdwg.mxu0
        %v991 = vmax.f32 %v903, 0.0
        %v992 = vmax.f32 %v952, 0.0
        %v993 = vmax.f32 %v905, 0.0
        %v994 = vmax.f32 %v954, 0.0
        %v995 = vmax.f32 %v908, 0.0
        %v996 = vmax.f32 %v957, 0.0
        %v997 = vmax.f32 %v910, 0.0
        %v998 = vmax.f32 %v959, 0.0
        %v999 = vmax.f32 %v913, 0.0
        %v1000 = vmax.f32 %v962, 0.0
        %v1001 = vmax.f32 %v915, 0.0
        %v1002 = vmax.f32 %v964, 0.0
        %v1003 = vmax.f32 %v918, 0.0
        %v1004 = vmax.f32 %v967, 0.0
        %v1005 = vmax.f32 %v920, 0.0
        %v1006 = vmax.f32 %v969, 0.0
        %v1007 = vmax.f32 %v923, 0.0
        %v1008 = vmax.f32 %v972, 0.0
        %v1009 = vmax.f32 %v925, 0.0
        %v1010 = vmax.f32 %v974, 0.0
        %v1011 = vmax.f32 %v928, 0.0
        %v1012 = vmax.f32 %v977, 0.0
        %v1013 = vmax.f32 %v930, 0.0
        %v1014 = vmax.f32 %v979, 0.0
        %v1015 = vmax.f32 %v933, 0.0
        %v1016 = vmax.f32 %v982, 0.0
        %v1017 = vmax.f32 %v935, 0.0
        %v1018 = vmax.f32 %v984, 0.0
        %v1019 = vmax.f32 %v938, 0.0
        %v1020 = vmax.f32 %v987, 0.0
        %v1021 = vmax.f32 %v940, 0.0
        %v1022 = vmax.f32 %v989, 0.0
        %v1023 = vld [vmem:[%s7] sm:$0xf]
        %v1024 = vld [vmem:[%s7 + $0x4] sm:$0xf]
        %v1025 = vld [vmem:[%s7 + $0x8] sm:$0xf]
        %v1026 = vld [vmem:[%s7 + $0xc] sm:$0xf]
        %v1027 = vpack.c.bf16 %v993, %v991
        %v1028 = vpack.c.bf16 %v994, %v992
        %v1029 = vpack.c.bf16 %v997, %v995
        %v1030 = vpack.c.bf16 %v998, %v996
        %v1031 = vpack.c.bf16 %v1001, %v999
        %v1032 = vpack.c.bf16 %v1002, %v1000
        %v1033 = vpack.c.bf16 %v1005, %v1003
        %v1034 = vpack.c.bf16 %v1006, %v1004
        %v1035 = vpack.c.bf16 %v1009, %v1007
        %v1036 = vpack.c.bf16 %v1010, %v1008
        %v1037 = vpack.c.bf16 %v1013, %v1011
        %v1038 = vpack.c.bf16 %v1014, %v1012
        %v1039 = vpack.c.bf16 %v1017, %v1015
        %v1040 = vpack.c.bf16 %v1018, %v1016
        %v1041 = vpack.c.bf16 %v1021, %v1019
        %v1042 = vpack.c.bf16 %v1022, %v1020
        %v1043 = vld [vmem:[%s8] sm:$0xff]
        %v1044 = vld [vmem:[%s8 + $0x8] sm:$0xff]
        %v1045 = vld [vmem:[%s8 + $0x10] sm:$0xff]
        %v1046 = vld [vmem:[%s8 + $0x18] sm:$0xff]
        %1048 = vset.pattern.permute.xlu0 0
        %1049 = vperm.xlu0 %1048, %v1043
        %v1050 = vpop.permute.xlu0 %1049
        %1053 = vset.pattern.permute.xlu0 0
        %1054 = vperm.xlu0 %1053, %v1044
        %v1055 = vpop.permute.xlu0 %1054
        %1058 = vset.pattern.permute.xlu0 0
        %1059 = vperm.xlu0 %1058, %v1045
        %v1060 = vpop.permute.xlu0 %1059
        %1063 = vset.pattern.permute.xlu0 0
        %1064 = vperm.xlu0 %1063, %v1046
        %v1065 = vpop.permute.xlu0 %1064
        %v1071 = vunpack.c.l.b16 %v1023
        %v1072 = vunpack.c.l.b16 %v1024
        %v1073 = vunpack.c.l.b16 %v1025
        %v1074 = vunpack.c.l.b16 %v1026
        %v1075 = vpack.c.b16 %v1072, %v1071
        %v1076 = vpack.c.b16 %v1074, %v1073
        %1079 = vmatpush.bf16.msra.mxu0 %v1041
        %1080 = vmatpush.bf16.msra.mxu0 %v1039
        %1081 = vmatpush.bf16.msra.mxu0 %v1037
        %1082 = vmatpush.bf16.msra.mxu0 %v1035
        %1083 = vmatpush.bf16.msra.mxu0 %v1033
        %1084 = vmatpush.bf16.msra.mxu0 %v1031
        %1085 = vmatpush.bf16.msra.mxu0 %v1029
        %1086 = vmatpush.bf16.msra.mxu0 %v1027
        %1087 = vmatmul.bf16.gmra.mxu0 %v1075
        %v1088 = vpop.f32.mrf.mxu0
        %v1089 = vadd.f32 %v1050, %v1088
        %v1090 = vpop.f32.mrf.mxu0
        %v1091 = vadd.f32 %v1055, %v1090
        %1092 = vmatmul.bf16.gmra.mxu0 %v1076
        %v1093 = vpop.f32.mrf.mxu0
        %v1094 = vadd.f32 %v1060, %v1093
        %v1095 = vpop.f32.mrf.mxu0
        %v1096 = vadd.f32 %v1065, %v1095
        %1097 = vdwg.mxu0
        %1098 = vmatpush.bf16.msra.mxu0 %v1042
        %1099 = vmatpush.bf16.msra.mxu0 %v1040
        %1100 = vmatpush.bf16.msra.mxu0 %v1038
        %1101 = vmatpush.bf16.msra.mxu0 %v1036
        %1102 = vmatpush.bf16.msra.mxu0 %v1034
        %1103 = vmatpush.bf16.msra.mxu0 %v1032
        %1104 = vmatpush.bf16.msra.mxu0 %v1030
        %1105 = vmatpush.bf16.msra.mxu0 %v1028
        %1106 = vmatmul.bf16.gmra.mxu0 %v1075
        %v1107 = vpop.f32.mrf.mxu0
        %v1108 = vadd.f32 %v1050, %v1107
        %v1109 = vpop.f32.mrf.mxu0
        %v1110 = vadd.f32 %v1055, %v1109
        %1111 = vmatmul.bf16.gmra.mxu0 %v1076
        %v1112 = vpop.f32.mrf.mxu0
        %v1113 = vadd.f32 %v1060, %v1112
        %v1114 = vpop.f32.mrf.mxu0
        %v1115 = vadd.f32 %v1065, %v1114
        %1116 = vdwg.mxu0
        %v1117 = vadd.f32 %v695, 1.0
        %v1118 = vadd.f32 %v696, 1.0
        %v1119 = vadd.f32 %v697, 1.0
        %v1120 = vadd.f32 %v698, 1.0
        %v1121 = vadd.f32 %v699, 1.0
        %v1122 = vadd.f32 %v700, 1.0
        %v1123 = vadd.f32 %v701, 1.0
        %v1124 = vadd.f32 %v702, 1.0
        %v1125 = vmul.f32 %v1089, %v1117
        %v1126 = vmul.f32 %v1108, %v1118
        %v1127 = vmul.f32 %v1091, %v1119
        %v1128 = vmul.f32 %v1110, %v1120
        %v1129 = vmul.f32 %v1094, %v1121
        %v1130 = vmul.f32 %v1113, %v1122
        %v1131 = vmul.f32 %v1096, %v1123
        %v1132 = vmul.f32 %v1115, %v1124
        %v1133 = vunpack.c.l.bf16 %v703
        %v1134 = vunpack.c.h.bf16 %v703
        %v1135 = vlaneseq
        %v1136 = vshrl.u32 %v1135, 7
        %v1137 = vrot.slane %v1133, 4
        %v1138 = vmax.f32 %v1133, %v1137
        %v1139 = vrot.slane %v1138, 2
        %v1140 = vmax.f32 %v1138, %v1139
        %v1141 = vrot.slane %v1140, 1
        %v1142 = vmax.f32 %v1140, %v1141
        %v1143 = vrot.slane %v1134, 4
        %v1144 = vmax.f32 %v1134, %v1143
        %v1145 = vrot.slane %v1144, 2
        %v1146 = vmax.f32 %v1144, %v1145
        %v1147 = vrot.slane %v1146, 1
        %v1148 = vmax.f32 %v1146, %v1147
        %vm1149 = vcmp.ge.f32.partialorder %v1133, %v1142
        %vm1150 = vcmp.ge.f32.partialorder %v1134, %v1148
        %v1151 = vsel %vm1149, %v1136, 8
        %v1152 = vsel %vm1150, %v1136, 8
        %v1153 = vrot.slane %v1151, 4
        %vm1154 = vcmp.lt.s32.totalorder %v1151, %v1153
        %v1155 = vsel %vm1154, %v1151, %v1153
        %v1156 = vrot.slane %v1155, 2
        %vm1157 = vcmp.lt.s32.totalorder %v1155, %v1156
        %v1158 = vsel %vm1157, %v1155, %v1156
        %v1159 = vrot.slane %v1158, 1
        %vm1160 = vcmp.lt.s32.totalorder %v1158, %v1159
        %v1161 = vsel %vm1160, %v1158, %v1159
        %v1162 = vrot.slane %v1152, 4
        %vm1163 = vcmp.lt.s32.totalorder %v1152, %v1162
        %v1164 = vsel %vm1163, %v1152, %v1162
        %v1165 = vrot.slane %v1164, 2
        %vm1166 = vcmp.lt.s32.totalorder %v1164, %v1165
        %v1167 = vsel %vm1166, %v1164, %v1165
        %v1168 = vrot.slane %v1167, 1
        %vm1169 = vcmp.lt.s32.totalorder %v1167, %v1168
        %v1170 = vsel %vm1169, %v1167, %v1168
        %vm1171 = vcmp.eq.s32.totalorder %v1136, %v1161
        %vm1172 = vcmp.eq.s32.totalorder %v1136, %v1170
        %v1173 = vsel %vm1171, 1, 0
        %v1174 = vsel %vm1172, 1, 0
        %v1175 = vcvt.s32.f32 %v1173
        %v1176 = vcvt.s32.f32 %v1174
        %v1177 = vpack.c.bf16 %v1175, %v1175
        %v1178 = vpack.c.bf16 %v1176, %v1176
        %v1179 = vld [vmem:[%s11] sm:$0xf]
        %v1180 = vld [vmem:[%s11 + $0x4] sm:$0xf]
        %v1181 = vld [vmem:[%s11 + $0x8] sm:$0xf]
        %v1182 = vld [vmem:[%s11 + $0xc] sm:$0xf]
        %v1187 = vunpack.c.l.b16 %v1179
        %v1188 = vunpack.c.l.b16 %v1180
        %v1189 = vunpack.c.l.b16 %v1181
        %v1190 = vunpack.c.l.b16 %v1182
        %v1191 = vpack.c.b16 %v1188, %v1187
        %v1192 = vpack.c.b16 %v1190, %v1189
        %v1194 = vsel %vm861, %v1191, 0
        %v1197 = vsel %vm861, %v1192, 0
        %v1200 = vsel %vm886, %v1177, 0
        %v1203 = vsel %vm886, %v1178, 0
        %1205 = vmatpush.bf16.msra.mxu0 0
        %1206 = vmatpush.bf16.msra.mxu0 0
        %1207 = vmatpush.bf16.msra.mxu0 0
        %1208 = vmatpush.bf16.msra.mxu0 0
        %1209 = vmatpush.bf16.msra.mxu0 0
        %1210 = vmatpush.bf16.msra.mxu0 0
        %1211 = vmatpush.bf16.msra.mxu0 0
        %1212 = vmatpush.bf16.msra.mxu0 %v1200
        %1213 = vmatmul.bf16.gmra.mxu0 %v1194
        %v1214 = vpop.f32.mrf.mxu0
        %v1215 = vadd.f32 0.0, %v1214
        %v1216 = vpop.f32.mrf.mxu0
        %v1217 = vadd.f32 0.0, %v1216
        %1218 = vmatmul.bf16.gmra.mxu0 %v1197
        %v1219 = vpop.f32.mrf.mxu0
        %v1220 = vadd.f32 0.0, %v1219
        %v1221 = vpop.f32.mrf.mxu0
        %v1222 = vadd.f32 0.0, %v1221
        %1223 = vdwg.mxu0
        %1224 = vmatpush.bf16.msra.mxu0 0
        %1225 = vmatpush.bf16.msra.mxu0 0
        %1226 = vmatpush.bf16.msra.mxu0 0
        %1227 = vmatpush.bf16.msra.mxu0 0
        %1228 = vmatpush.bf16.msra.mxu0 0
        %1229 = vmatpush.bf16.msra.mxu0 0
        %1230 = vmatpush.bf16.msra.mxu0 0
        %1231 = vmatpush.bf16.msra.mxu0 %v1203
        %1232 = vmatmul.bf16.gmra.mxu0 %v1194
        %v1233 = vpop.f32.mrf.mxu0
        %v1234 = vadd.f32 0.0, %v1233
        %v1235 = vpop.f32.mrf.mxu0
        %v1236 = vadd.f32 0.0, %v1235
        %1237 = vmatmul.bf16.gmra.mxu0 %v1197
        %v1238 = vpop.f32.mrf.mxu0
        %v1239 = vadd.f32 0.0, %v1238
        %v1240 = vpop.f32.mrf.mxu0
        %v1241 = vadd.f32 0.0, %v1240
        %1242 = vdwg.mxu0
        %v1243 = vld [vmem:[%s466] sm:$0xff]
        %v1244 = vld [vmem:[%s466 + $0x8] sm:$0xff]
        %v1245 = vunpack.c.l.bf16 %v1243
        %v1246 = vunpack.c.h.bf16 %v1243
        %v1247 = vunpack.c.l.bf16 %v1244
        %v1248 = vunpack.c.h.bf16 %v1244
        %v1249 = vmul.f32 %v1245, %v1215
        %v1250 = vmul.f32 %v1246, %v1234
        %v1251 = vmul.f32 %v1247, %v1217
        %v1252 = vmul.f32 %v1248, %v1236
        %v1253 = vld [vmem:[%s471] sm:$0xff]
        %v1254 = vld [vmem:[%s471 + $0x8] sm:$0xff]
        %v1255 = vunpack.c.l.bf16 %v1253
        %v1256 = vunpack.c.h.bf16 %v1253
        %v1257 = vunpack.c.l.bf16 %v1254
        %v1258 = vunpack.c.h.bf16 %v1254
        %v1259 = vmul.f32 %v1255, %v1220
        %v1260 = vmul.f32 %v1256, %v1239
        %v1261 = vmul.f32 %v1257, %v1222
        %v1262 = vmul.f32 %v1258, %v1241
        %v1263 = vadd.f32 %v1125, 1.0
        %v1264 = vadd.f32 %v1126, 1.0
        %v1265 = vadd.f32 %v1127, 1.0
        %v1266 = vadd.f32 %v1128, 1.0
        %v1267 = vmul.f32 %v584, %v1263
        %v1268 = vmul.f32 %v585, %v1264
        %v1269 = vmul.f32 %v586, %v1265
        %v1270 = vmul.f32 %v587, %v1266
        %v1271 = vadd.f32 %v1267, %v1129
        %v1272 = vadd.f32 %v1268, %v1130
        %v1273 = vadd.f32 %v1269, %v1131
        %v1274 = vadd.f32 %v1270, %v1132
        %v1275 = vpack.c.bf16 %v1272, %v1271
        %v1276 = vpack.c.bf16 %v1274, %v1273
        %1277 = vst [vmem:[%s451] sm:$0xff] %v1275
        %1278 = vst [vmem:[%s451 + $0x8] sm:$0xff] %v1276
        %v1279 = vadd.f32 %v1249, 1.0
        %v1280 = vadd.f32 %v1250, 1.0
        %v1281 = vadd.f32 %v1251, 1.0
        %v1282 = vadd.f32 %v1252, 1.0
        %v1283 = vmul.f32 %v588, %v1279
        %v1284 = vmul.f32 %v589, %v1280
        %v1285 = vmul.f32 %v590, %v1281
        %v1286 = vmul.f32 %v591, %v1282
        %v1287 = vadd.f32 %v1283, %v1259
        %v1288 = vadd.f32 %v1284, %v1260
        %v1289 = vadd.f32 %v1285, %v1261
        %v1290 = vadd.f32 %v1286, %v1262
        %v1291 = vpack.c.bf16 %v1288, %v1287
        %v1292 = vpack.c.bf16 %v1290, %v1289
        %1293 = vst [vmem:[%s451 + $0x10] sm:$0xff] %v1291
        %1294 = vst [vmem:[%s451 + $0x18] sm:$0xff] %v1292
        %s1295 = sand.u32 %s306, 1
        %s1296 = scalar_lea.sflag [#allocation3], %s1295
        %s1297 = sand.u32 %s306, 1
        %s1298 = smul.addr %s1297, 32
        %s1299 = scalar_lea.vmem [#allocation2], %s1298
        // Predicated region
        $region69: #{tpu_custom_call.1} parent=67 // pred_check
          %p1300 = pneg %p316
        $region70: #{tpu_custom_call.1} parent=67 // pred_check_branch
          %1302 = sbr.rel (%p1300) target = $region72
        $region71: #{tpu_custom_call.1} parent=67 // pred_region
          %1304 = vsyncadd %s1296, 0
          %s1305 = smul.addr %s26, 8
          %s1306 = smul.addr %s1305, 4
          %s1307 = scalar_lea.hbm %s12, %s1306
          %s1308 = sshll.u32 %s1299, 4
          %s1309 = int_to_ptr.vmem [resolvable:$true] %s1308
          %s1310 = sshll.u32 %s1307, 4
          %s1311 = int_to_ptr.hbm [resolvable:$true] %s1310
          %1316 = dma.vmem_to_hbm [thread:$0]  %s1309, 512, %s1311, %s1296, 128, 128, 8
        $region72: #{tpu_custom_call.1} parent=67 // pred_fallthru
          _
      $region68: #{tpu_custom_call.1} parent=5 // pred_fallthru
        _
      %p1317 = scmp.le.s32.totalorder 2, %s21
      // Predicated region
      $region73: #{tpu_custom_call.1} parent=5 // pred_check
        %p1318 = pneg %p1317
      $region74: #{tpu_custom_call.1} parent=5 // pred_check_branch
        %1320 = sbr.rel (%p1318) target = $region76
      $region75: #{tpu_custom_call.1} parent=5 // pred_region
        %s1321 = ssub.s32 %s21, 2
        // Predicated region
        $region77: #{tpu_custom_call.1} parent=75 // pred_check
          %p1322 = pneg %p322
        $region78: #{tpu_custom_call.1} parent=75 // pred_check_branch
          %1324 = sbr.rel (%p1322) target = $region80
        $region79: #{tpu_custom_call.1} parent=75 // pred_region
          %s1325 = sand.u32 %s307, 1
          %s1326 = scalar_lea.sflag [#allocation3], %s1325
          %s1327 = sand.u32 %s307, 1
          %s1328 = smul.addr %s1327, 32
          %s1329 = scalar_lea.vmem [#allocation2], %s1328
          %1331 = dma.done %s1326, 512
        $region80: #{tpu_custom_call.1} parent=75 // pred_fallthru
          _
      $region76: #{tpu_custom_call.1} parent=5 // pred_fallthru
        _
    $region6: #{tpu_custom_call.1} parent=1 // loop_footer
      %s25 = sadd.s32 1, %s21
    $region7: #{tpu_custom_call.1} parent=1 // loop_footer_branch
      %20 = sbr.rel target = $region3
    $region8: #{tpu_custom_call.1} parent=1 // loop_exit
      _
    %1332 = vsyncpa [#allocation3], 1
    %s1333 = scalar_lea.sflag [#allocation3], 1
    %1334 = vsyncpa %s1333, 1

</llo_original>
